<compile_context>
chip_gen: v6e
topology: v6e:2x2x1
jax: 0.10.0
libtpu: 0.0.40
codegen_flags: <defaults>
</compile_context>

<pallas_src>
import math
from functools import partial

import numpy as np
import jax
import jax.numpy as jnp
from jax.experimental import pallas as pl
from jax.experimental.pallas import tpu as pltpu

# ----------------------------- configuration --------------------------------
BATCH = 2
NUM_FEATURES = 2                          # feature pyramid levels
NUM_ANCHORS = 2                           # anchors per level
NUM_CLASSES = 4
EMBEDDING_DIM = 32
NID = 16
MODEL_IMAGE_SIZE = (64, 64)               # (W, H)
LABEL_SMOOTH = 0.0
IGNORE_THRESHOLD = 0.5
FEATURE_SIZES = [(8, 8), (4, 4)]          # (W, H) per level
ANCHORS_SHAPE_LEVELS = np.array(
    [[[8.0, 8.0], [12.0, 20.0]],
     [[24.0, 24.0], [32.0, 48.0]]], dtype=np.float32)        # (L, A, 2) = (w, h) in pixels
ANCHORS_SHAPE = ANCHORS_SHAPE_LEVELS.reshape(-1, 2)
EMB_SCALE = math.sqrt(2) * math.log(NID - 1) if NID > 1 else 1.0
FEATURE_CHANNELS = NUM_ANCHORS * (5 + NUM_CLASSES) + EMBEDDING_DIM


def _round_up(n, m):
    return ((n + m - 1) // m) * m


# ----------------------------- fused Pallas kernel ---------------------------
def _jde_fused_kernel(conf_ref, det_ref, emb_ref, wt_ref, out_ref, *,
                      rows, num_classes, emb_dim, img_w, img_h, num_pos):
    eps = 1e-7
    C = num_classes
    D = emb_dim

    # ---- confidence: BCE-with-logits, single combined masked sum --------------
    cz = conf_ref[...]                       # (3*rows, 128) lane-dense slab
    x = cz[0:rows, :]                        # raw conf logits
    z = cz[rows:2 * rows, :]                 # obj labels {0,1}
    w = cz[2 * rows:3 * rows, :]             # weight = obj + noobj
    bce = jnp.maximum(x, 0.0) - x * z + jnp.log(1.0 + jnp.exp(-jnp.abs(x)))
    loss_conf = jnp.sum(bce * w, keepdims=True)                        # (1, 1)

    # ---- localization: CIoU on feature-major (rows, P) det slab ----------------
    det = det_ref[...]                       # (11 + 2C, P_pad)
    b1x, b1y, b1w, b1h = det[0:1], det[1:2], det[2:3], det[3:4]        # pred box
    pcls = det[4:4 + C]                                                # pred cls logits
    pred_atan = det[4 + C:5 + C]
    o = 5 + C
    b2x, b2y, b2w, b2h = det[o:o + 1], det[o + 1:o + 2], det[o + 2:o + 3], det[o + 3:o + 4]
    pm = det[o + 4:o + 5]                                              # positive mask
    tgt_atan = det[o + 5:o + 6]
    plab = det[o + 6:o + 6 + C]                                        # smooth labels

    b1xmin, b1xmax = b1x - 0.5 * b1w, b1x + 0.5 * b1w
    b1ymin, b1ymax = b1y - 0.5 * b1h, b1y + 0.5 * b1h
    b2xmin, b2xmax = b2x - 0.5 * b2w, b2x + 0.5 * b2w
    b2ymin, b2ymax = b2y - 0.5 * b2h, b2y + 0.5 * b2h

    iw = jnp.maximum(jnp.minimum(b1xmax, b2xmax) - jnp.maximum(b1xmin, b2xmin), 0.0)
    ih = jnp.maximum(jnp.minimum(b1ymax, b2ymax) - jnp.maximum(b1ymin, b2ymin), 0.0)
    inter = iw * ih
    union = b1w * b1h + b2w * b2h - inter
    iou = inter / jnp.maximum(union, eps)

    center_d = (b1x - b2x) ** 2 + (b1y - b2y) ** 2
    ew = jnp.maximum(b1xmax, b2xmax) - jnp.minimum(b1xmin, b2xmin)
    eh = jnp.maximum(b1ymax, b2ymax) - jnp.minimum(b1ymin, b2ymin)
    enclose_d = ew * ew + eh * eh

    v = (4.0 / (math.pi ** 2)) * (pred_atan - tgt_atan) ** 2
    alpha = v / jnp.maximum(1.0 - iou + v, eps)
    ciou = iou - center_d / jnp.maximum(enclose_d, eps) - alpha * v
    scale = 2.0 - (b2w * (1.0 / img_w)) * (b2h * (1.0 / img_h))        # box_loss_scale
    loss_loc = jnp.sum((1.0 - ciou) * scale * pm, keepdims=True)       # (1, 1)

    # ---- classification: log-softmax over classes (sublane axis) ---------------
    mmax = jnp.max(pcls, axis=0, keepdims=True)
    lse = jnp.log(jnp.sum(jnp.exp(pcls - mmax), axis=0, keepdims=True)) + mmax
    ce = -jnp.sum(plab * (pcls - lse), axis=0, keepdims=True)          # (1, P)
    loss_cls = jnp.sum(ce * pm, keepdims=True)                         # (1, 1)

    # ---- embedding ID loss: rsqrt-normalize -> bf16 MXU matmul -> label-index CE
    es = emb_ref[...]                        # (E_pad, D+2)
    emb = es[:, 0:D]
    lab_i = es[:, D:D + 1].astype(jnp.int32)                           # track-id labels
    em = es[:, D + 1:D + 2]                                            # valid mask
    sumsq = jnp.sum(emb * emb, axis=1, keepdims=True)
    # F.normalize(eps=1e-12): x / max(||x||, 1e-12) == x * rsqrt(max(sumsq, 1e-24))
    emb_n = emb * jax.lax.rsqrt(jnp.maximum(sumsq, 1e-24))
    # emb_scale is pre-folded into wt_ref (= emb_scale * W^T), shipped as bf16.
    id_logits = jnp.dot(emb_n.astype(jnp.bfloat16), wt_ref[...],
                        preferred_element_type=jnp.float32)            # (E, nID) f32
    idm = jnp.max(id_logits, axis=1, keepdims=True)
    idlse = jnp.log(jnp.sum(jnp.exp(id_logits - idm), axis=1, keepdims=True)) + idm
    col = jax.lax.broadcasted_iota(jnp.int32, id_logits.shape, 1)
    logit_at_lab = jnp.sum(jnp.where(col == lab_i, id_logits, 0.0),
                           axis=1, keepdims=True)                      # (E, 1)
    id_ce = idlse - logit_at_lab                                       # CE per row
    n_valid = jnp.maximum(jnp.sum(em, keepdims=True), 1.0)             # (1, 1)
    loss_emb = jnp.sum(id_ce * em, keepdims=True) / n_valid            # CE mean

    # ---- combine + lane-dense output --------------------------------------------
    # num_pos = batchsize (reference JDELoss with mean=False).
    total = (loss_conf + loss_cls + loss_loc + loss_emb) * (1.0 / float(num_pos))
    lane = jax.lax.broadcasted_iota(jnp.int32, (1, 128), 1)
    out_ref[...] = (jnp.where(lane == 0, total, 0.0)
                    + jnp.where(lane == 1, loss_conf, 0.0)
                    + jnp.where(lane == 2, loss_loc, 0.0)
                    + jnp.where(lane == 3, loss_cls, 0.0)
                    + jnp.where(lane == 4, loss_emb, 0.0))


_VMEM = pl.BlockSpec(memory_space=pltpu.MemorySpace.VMEM)


# ----------------------------- JAX glue: head decode -------------------------
def head_process(features, model_image_size, num_anchors, anchors_shape_levels,
                 embedding_dim, num_classes):
    """Decode NCHW feature maps; conf channel is returned as RAW LOGITS (BCE-with-logits
    is computed inside the Pallas kernel)."""
    img_w, img_h = model_image_size
    boxes, confs, clss, embs = [], [], [], []
    for lvl, f in enumerate(features):
        B, _, H, W = f.shape
        det_ch = num_anchors * (5 + num_classes)
        det = f[:, :det_ch]
        emb = f[:, det_ch:]
        det = det.reshape(B, num_anchors, 5 + num_classes, H, W)
        det = jnp.transpose(det, (0, 3, 4, 1, 2))       # (B, H, W, A, 5+C)
        stride_w = img_w / W
        stride_h = img_h / H
        gx = jnp.arange(W, dtype=jnp.float32).reshape(1, 1, W, 1)
        gy = jnp.arange(H, dtype=jnp.float32).reshape(1, H, 1, 1)
        aw = jnp.asarray(anchors_shape_levels[lvl][:, 0]).reshape(1, 1, 1, num_anchors)
        ah = jnp.asarray(anchors_shape_levels[lvl][:, 1]).reshape(1, 1, 1, num_anchors)
        x = (jax.nn.sigmoid(det[..., 0]) + gx) * stride_w
        y = (jax.nn.sigmoid(det[..., 1]) + gy) * stride_h
        w = jnp.exp(det[..., 2]) * aw
        h = jnp.exp(det[..., 3]) * ah
        conf_logit = det[..., 4]                        # raw logits
        cls_logits = det[..., 5:]
        boxes.append(jnp.stack([x, y, w, h], axis=-1).reshape(B, H * W * num_anchors, 4))
        confs.append(conf_logit.reshape(B, H * W * num_anchors))
        clss.append(cls_logits.reshape(B, H * W * num_anchors, num_classes))
        embs.append(jnp.transpose(emb, (0, 2, 3, 1)).reshape(B, H * W, embedding_dim))
    return (jnp.concatenate(boxes, axis=1), jnp.concatenate(confs, axis=1),
            jnp.concatenate(clss, axis=1), jnp.concatenate(embs, axis=1))


# ----------------------------- jitted device forward --------------------------
@partial(jax.jit, static_argnames=("p_pad", "e_pad"))
def _device_forward(feat0, feat1, host_f32, idx_i32, wt_bf16, *, p_pad, e_pad):
    features = [feat0, feat1]
    B = feat0.shape[0]
    pred_box, conf_logit, pred_cls, embeddings = head_process(
        features, MODEL_IMAGE_SIZE, NUM_ANCHORS, ANCHORS_SHAPE_LEVELS,
        EMBEDDING_DIM, NUM_CLASSES)
    N = pred_box.shape[1]
    C = NUM_CLASSES
    D = EMBEDDING_DIM

    rows = _round_up(B * N, 8 * 128) // 128

    # unpack the single host f32 buffer (static slices inside the jit)
    n_zw = 2 * rows * 128
    n_det = (6 + C) * p_pad
    zw = host_f32[:n_zw].reshape(2 * rows, 128)                       # [z ; w]
    host_det = host_f32[n_zw:n_zw + n_det].reshape(6 + C, p_pad)      # tbox|pmask|tatan|lab
    emb_meta = host_f32[n_zw + n_det:n_zw + n_det + 2 * e_pad].reshape(e_pad, 2)
    pos_idx = idx_i32[:p_pad]
    emb_idx = idx_i32[p_pad:p_pad + e_pad]

    # (1) conf slab: lane-dense (3*rows, 128) = [logits ; labels ; weights]
    conf_pad = jnp.pad(conf_logit.reshape(B * N), (0, rows * 128 - B * N)).reshape(rows, 128)
    conf_slab = jnp.concatenate([conf_pad, zw], axis=0)

    # (2) positives det slab, feature-major (rows, P_pad)
    predall = jnp.concatenate([pred_box, pred_cls], axis=-1).reshape(B * N, 4 + C)
    dev_det = jnp.take(predall, pos_idx, axis=0).T                    # (4+C, P_pad)
    # TODO(synk): arctan stays in the jitted XLA region (pred side); target-side
    #             arctan is host-precomputed inside host_det.
    pred_atan = jnp.arctan(dev_det[2:3, :] / jnp.maximum(dev_det[3:4, :], 1e-6))
    det_slab = jnp.concatenate([dev_det, pred_atan, host_det], axis=0)  # (11+2C, P_pad)

    # (3) embedding slab: [emb(D) | id label | mask]
    ncells = embeddings.shape[1]
    emb_pos = jnp.take(embeddings.reshape(B * ncells, D), emb_idx, axis=0)  # (E_pad, D)
    emb_slab = jnp.concatenate([emb_pos, emb_meta], axis=1)                 # (E_pad, D+2)

    kernel = partial(_jde_fused_kernel,
                     rows=rows, num_classes=C, emb_dim=D,
                     img_w=float(MODEL_IMAGE_SIZE[0]),
                     img_h=float(MODEL_IMAGE_SIZE[1]),
                     num_pos=int(B))
    out = pl.pallas_call(
        kernel,
        out_shape=jax.ShapeDtypeStruct((1, 128), jnp.float32),
        in_specs=[_VMEM] * 4,
        out_specs=_VMEM,
    )(conf_slab, det_slab, emb_slab, wt_bf16)
    return out


# ----------------------------- host glue: matching ---------------------------
def _box_iou_np(box1, box2, x1y1x2y2=False):
    if not x1y1x2y2:
        b1 = np.concatenate([box1[:, :2] - box1[:, 2:4] / 2,
                             box1[:, :2] + box1[:, 2:4] / 2], axis=1)
        b2 = np.concatenate([box2[:, :2] - box2[:, 2:4] / 2,
                             box2[:, :2] + box2[:, 2:4] / 2], axis=1)
    else:
        b1, b2 = box1, box2
    ix1 = np.maximum(b1[:, None, 0], b2[None, :, 0])
    iy1 = np.maximum(b1[:, None, 1], b2[None, :, 1])
    ix2 = np.minimum(b1[:, None, 2], b2[None, :, 2])
    iy2 = np.minimum(b1[:, None, 3], b2[None, :, 3])
    inter = np.clip(ix2 - ix1, 0, None) * np.clip(iy2 - iy1, 0, None)
    a1 = (b1[:, 2] - b1[:, 0]) * (b1[:, 3] - b1[:, 1])
    a2 = (b2[:, 2] - b2[:, 0]) * (b2[:, 3] - b2[:, 1])
    union = a1[:, None] + a2[None, :] - inter
    return inter / np.maximum(union, 1e-16)


# TODO(synk): data-dependent scatter matching stays on host (NumPy), mirroring the
#             Python loops in the original PyTorch match_obj/match_noobj.
def match_obj(targets_np, targets_each_batch):
    bs = len(targets_each_batch)
    A, L = NUM_ANCHORS, NUM_FEATURES
    obj_mask = [np.full((bs, FEATURE_SIZES[i][1], FEATURE_SIZES[i][0], A), -1, dtype=np.int64)
                for i in range(L)]
    noobj_mask = [np.ones((bs, FEATURE_SIZES[i][1], FEATURE_SIZES[i][0], A), dtype=np.int64)
                  for i in range(L)]
    fs = np.array(FEATURE_SIZES, dtype=np.int64)        # (L, 2) = (W, H)
    if targets_np.size > 0:
        gt = np.concatenate([np.zeros((len(targets_np), 2), np.float32),
                             targets_np[:, 2:4]], axis=1)
        ash = np.concatenate([np.zeros((len(ANCHORS_SHAPE), 2), np.float32),
                              ANCHORS_SHAPE], axis=1)
        iou = _box_iou_np(gt, ash, x1y1x2y2=False)
        cumsum = 0
        for bi, n in enumerate(targets_each_batch):
            if n == 0:
                continue
            max_idx = np.argmax(iou[cumsum:cumsum + n, :], axis=1)
            level = max_idx // A
            aa = max_idx % A
            X = np.floor(targets_np[cumsum:cumsum + n, 0] / MODEL_IMAGE_SIZE[0]
                         * fs[level, 0]).astype(np.int64)
            Y = np.floor(targets_np[cumsum:cumsum + n, 1] / MODEL_IMAGE_SIZE[1]
                         * fs[level, 1]).astype(np.int64)
            for i, (l, y, x, a) in enumerate(zip(level, Y, X, aa)):
                obj_mask[l][bi, y, x, a] = cumsum + i
                noobj_mask[l][bi, y, x, a] = 0
            if targets_np[cumsum:cumsum + n, 5].min() >= 0:
                for j in range(L):
                    noobj_mask[j][bi, :, :, :] = 0
            cumsum += n
    obj = np.concatenate([m.reshape(bs, -1) for m in obj_mask], axis=1)
    noobj = np.concatenate([m.reshape(bs, -1) for m in noobj_mask], axis=1)
    return obj, noobj


def match_noobj(anchors_full, targets_np, targets_each_batch, noobj_mask):
    if targets_np.size == 0:
        return noobj_mask
    iou = _box_iou_np(targets_np[:, 0:4], anchors_full, x1y1x2y2=False)
    cumsum = 0
    for bi, n in enumerate(targets_each_batch):
        if n == 0:
            continue
        max_iou = iou[cumsum:cumsum + n, :].max(axis=0)
        noobj_mask[bi][max_iou > IGNORE_THRESHOLD] = 0
        cumsum += n
    return noobj_mask


def build_full_anchors():
    img_w, img_h = MODEL_IMAGE_SIZE
    boxes = []
    for lvl, (W, H) in enumerate(FEATURE_SIZES):
        stride_w, stride_h = img_w / W, img_h / H
        for y in range(H):
            for x in range(W):
                for a in range(NUM_ANCHORS):
                    aw, ah = ANCHORS_SHAPE_LEVELS[lvl][a]
                    boxes.append([(x + 0.5) * stride_w, (y + 0.5) * stride_h, aw, ah])
    return np.array(boxes, dtype=np.float32)


# ----------------------------- host side input builder -----------------------
def _build_device_inputs(obj_mask, noobj_mask, targets_np, classifier_w, B, N):
    C = NUM_CLASSES
    rows = _round_up(B * N, 8 * 128) // 128

    # conf targets / weights, lane-dense (rows, 128) each
    zf = np.zeros(rows * 128, np.float32)
    wf = np.zeros(rows * 128, np.float32)
    obj_labels = (obj_mask >= 0).astype(np.float32).reshape(-1)
    zf[:B * N] = obj_labels
    wf[:B * N] = obj_labels + noobj_mask.astype(np.float32).reshape(-1)

    # positives (detection): host half of the det slab, P padded to 128 lanes
    pos = obj_mask >= 0
    b_idx, n_idx = np.nonzero(pos)
    t_idx = obj_mask[pos]
    P = len(t_idx)
    P_pad = max(128, _round_up(max(P, 1), 128))
    pos_idx = np.zeros(P_pad, np.int32)
    host_det = np.zeros((6 + C, P_pad), np.float32)     # tbox(4)|pmask(1)|tgt_atan(1)|labels(C)
    if P > 0:
        pos_idx[:P] = (b_idx * N + n_idx).astype(np.int32)
        tb = targets_np[t_idx, 0:4]
        host_det[0:4, :P] = tb.T
        host_det[4, :P] = 1.0
        host_det[5, :P] = np.arctan(tb[:, 2] / np.maximum(tb[:, 3], 1e-6))
        cls_labels = targets_np[t_idx, 4].astype(np.int64)
        onehot = np.zeros((P, C), np.float32)
        onehot[np.arange(P), cls_labels] = 1.0
        smooth = onehot * (1.0 - LABEL_SMOOTH) + LABEL_SMOOTH / C
        host_det[6:6 + C, :P] = smooth.T

    # embedding selection (mirrors PyTorch embed_mask logic)
    ncells = N // NUM_ANCHORS
    emb_count = 0
    emb_sel = np.zeros(0, np.int64)
    targets_id = np.zeros(0, np.int64)
    if targets_np.size > 0:
        tmp = obj_mask.reshape(B, -1, NUM_ANCHORS)
        embed_mask = np.full((B, ncells, NUM_ANCHORS), -1, np.int64)
        sel = tmp >= 0
        embed_mask[sel] = targets_np[tmp[sel], 5].astype(np.int64)
        embed_mask_max = embed_mask.max(axis=-1)
        e_pos = embed_mask_max >= 0
        eb, ec = np.nonzero(e_pos)
        emb_count = len(eb)
        if emb_count > 0:
            emb_sel = (eb * ncells + ec).astype(np.int64)
            targets_id = embed_mask_max[e_pos]
    E_pad = max(8, _round_up(max(emb_count, 1), 8))
    emb_idx = np.zeros(E_pad, np.int32)
    emb_meta = np.zeros((E_pad, 2), np.float32)         # [:,0]=track id, [:,1]=valid mask
    if emb_count > 0:
        emb_idx[:emb_count] = emb_sel.astype(np.int32)
        emb_meta[:emb_count, 0] = targets_id.astype(np.float32)
        emb_meta[:emb_count, 1] = 1.0

    # pack everything into 3 host->device transfers
    host_f32 = np.concatenate(
        [zf, wf, host_det.reshape(-1), emb_meta.reshape(-1)]).astype(np.float32)
    idx_i32 = np.concatenate([pos_idx, emb_idx]).astype(np.int32)
    # classifier W^T with emb_scale folded in, shipped as bf16 (MXU operand)
    wt_bf16 = jnp.asarray(EMB_SCALE * np.asarray(classifier_w, np.float32).T,
                          dtype=jnp.bfloat16)

    return jnp.asarray(host_f32), jnp.asarray(idx_i32), wt_bf16, P_pad, E_pad


# ----------------------------- forward ---------------------------------------
def jde_loss_forward(features, targets_list, classifier_w):
    B = features[0].shape[0]
    targets_each_batch = [len(t) for t in targets_list]
    targets_np = (np.concatenate(targets_list, axis=0).astype(np.float32)
                  if sum(targets_each_batch) else np.zeros((0, 6), np.float32))

    # host-side data-dependent matching (NumPy, mirrors match_obj / match_noobj)
    obj_mask, noobj_mask = match_obj(targets_np, targets_each_batch)
    noobj_mask = match_noobj(build_full_anchors(), targets_np, targets_each_batch, noobj_mask)

    N = obj_mask.shape[1]
    host_f32, idx_i32, wt_bf16, p_pad, e_pad = _build_device_inputs(
        obj_mask, noobj_mask, targets_np, classifier_w, B, N)

    out = _device_forward(features[0], features[1], host_f32, idx_i32, wt_bf16,
                          p_pad=p_pad, e_pad=e_pad)
    # out lanes: [0] total/num_pos, [1] loss_conf, [2] loss_loc, [3] loss_cls, [4] loss_emb
    return out[0, 0]


# ----------------------------- main -------------------------------------------
if __name__ == "__main__":
    key = jax.random.PRNGKey(0)
    k1, k2, k3 = jax.random.split(key, 3)

    # two feature levels, NCHW like the PyTorch module expects
    feat0 = jax.random.normal(k1, (BATCH, FEATURE_CHANNELS, FEATURE_SIZES[0][1],
                                   FEATURE_SIZES[0][0]), dtype=jnp.float32) * 0.1
    feat1 = jax.random.normal(k2, (BATCH, FEATURE_CHANNELS, FEATURE_SIZES[1][1],
                                   FEATURE_SIZES[1][0]), dtype=jnp.float32) * 0.1

    # nn.Linear(embedding_dim, nID, bias=False) weight, deterministic init
    classifier_w = np.asarray(
        jax.random.normal(k3, (NID, EMBEDDING_DIM), dtype=jnp.float32) * 0.05)

    # targets per batch image: [cx, cy, w, h, cls, track_id] in pixels
    targets_list = [
        np.array([[10.0, 12.0,  8.0, 10.0, 1.0,  3.0],
                  [30.0, 34.0, 14.0, 22.0, 0.0,  5.0],
                  [50.0, 20.0, 30.0, 40.0, 2.0,  7.0]], dtype=np.float32),
        np.array([[16.0, 48.0, 10.0,  8.0, 3.0,  2.0],
                  [40.0, 40.0, 28.0, 30.0, 1.0, -1.0]], dtype=np.float32),
    ]

    loss = jde_loss_forward([feat0, feat1], targets_list, classifier_w)
    loss = jax.block_until_ready(loss)
    assert np.isfinite(np.asarray(loss)), f"non-finite loss: {loss}"
    print("KERNEL_OK")
</pallas_src>

<mosaic_0001>
module attributes {stable_mosaic.version = 11 : i64} {
  func.func @_jde_fused_kernel(%arg0: memref<24x128xf32, #tpu.memory_space<vmem>>, %arg1: memref<19x128xf32, #tpu.memory_space<vmem>>, %arg2: memref<8x34xf32, #tpu.memory_space<vmem>>, %arg3: memref<32x16xbf16, #tpu.memory_space<vmem>>, %arg4: memref<1x128xf32, #tpu.memory_space<vmem>>) attributes {dimension_semantics = [], scalar_prefetch = 0 : i64, scratch_operands = 0 : i64, tpu.core_type = #tpu.core_type<tc>} {
    %c0 = arith.constant 0 : index
    %c0_0 = arith.constant 0 : index
    %0 = vector.load %arg0[%c0, %c0_0] : memref<24x128xf32, #tpu.memory_space<vmem>>, vector<24x128xf32>
    %1 = vector.extract_strided_slice %0 {offsets = [0, 0], sizes = [8, 128], strides = [1, 1]} : vector<24x128xf32> to vector<8x128xf32>
    %2 = vector.extract_strided_slice %0 {offsets = [8, 0], sizes = [8, 128], strides = [1, 1]} : vector<24x128xf32> to vector<8x128xf32>
    %3 = vector.extract_strided_slice %0 {offsets = [16, 0], sizes = [8, 128], strides = [1, 1]} : vector<24x128xf32> to vector<8x128xf32>
    %cst = arith.constant 0.000000e+00 : f32
    %4 = vector.broadcast %cst : f32 to vector<8x128xf32>
    %5 = arith.maximumf %1, %4 : vector<8x128xf32>
    %6 = arith.mulf %1, %2 : vector<8x128xf32>
    %7 = arith.subf %5, %6 : vector<8x128xf32>
    %8 = math.absf %1 : vector<8x128xf32>
    %cst_1 = arith.constant 0.000000e+00 : f32
    %9 = vector.broadcast %cst_1 : f32 to vector<8x128xf32>
    %10 = arith.subf %9, %8 : vector<8x128xf32>
    %11 = math.exp %10 : vector<8x128xf32>
    %cst_2 = arith.constant 1.000000e+00 : f32
    %12 = vector.broadcast %cst_2 : f32 to vector<8x128xf32>
    %13 = arith.addf %12, %11 : vector<8x128xf32>
    %14 = math.log %13 : vector<8x128xf32>
    %15 = arith.addf %7, %14 : vector<8x128xf32>
    %16 = arith.mulf %15, %3 : vector<8x128xf32>
    %17 = vector.shape_cast %16 : vector<8x128xf32> to vector<1x8x128xf32>
    %cst_3 = arith.constant dense<0.000000e+00> : vector<1xf32>
    %18 = vector.multi_reduction <add>, %17, %cst_3 [1, 2] : vector<1x8x128xf32> to vector<1xf32>
    %19 = vector.shape_cast %18 : vector<1xf32> to vector<1x1x1xf32>
    %20 = vector.extract %19[0, 0, 0] : f32 from vector<1x1x1xf32>
    %21 = vector.broadcast %20 : f32 to vector<1x1xf32>
    %c0_4 = arith.constant 0 : index
    %c0_5 = arith.constant 0 : index
    %22 = vector.load %arg1[%c0_4, %c0_5] : memref<19x128xf32, #tpu.memory_space<vmem>>, vector<19x128xf32>
    %23 = vector.extract_strided_slice %22 {offsets = [0, 0], sizes = [1, 128], strides = [1, 1]} : vector<19x128xf32> to vector<1x128xf32>
    %24 = vector.extract_strided_slice %22 {offsets = [1, 0], sizes = [1, 128], strides = [1, 1]} : vector<19x128xf32> to vector<1x128xf32>
    %25 = vector.extract_strided_slice %22 {offsets = [2, 0], sizes = [1, 128], strides = [1, 1]} : vector<19x128xf32> to vector<1x128xf32>
    %26 = vector.extract_strided_slice %22 {offsets = [3, 0], sizes = [1, 128], strides = [1, 1]} : vector<19x128xf32> to vector<1x128xf32>
    %27 = vector.extract_strided_slice %22 {offsets = [4, 0], sizes = [4, 128], strides = [1, 1]} : vector<19x128xf32> to vector<4x128xf32>
    %28 = vector.extract_strided_slice %22 {offsets = [8, 0], sizes = [1, 128], strides = [1, 1]} : vector<19x128xf32> to vector<1x128xf32>
    %29 = vector.extract_strided_slice %22 {offsets = [9, 0], sizes = [1, 128], strides = [1, 1]} : vector<19x128xf32> to vector<1x128xf32>
    %30 = vector.extract_strided_slice %22 {offsets = [10, 0], sizes = [1, 128], strides = [1, 1]} : vector<19x128xf32> to vector<1x128xf32>
    %31 = vector.extract_strided_slice %22 {offsets = [11, 0], sizes = [1, 128], strides = [1, 1]} : vector<19x128xf32> to vector<1x128xf32>
    %32 = vector.extract_strided_slice %22 {offsets = [12, 0], sizes = [1, 128], strides = [1, 1]} : vector<19x128xf32> to vector<1x128xf32>
    %33 = vector.extract_strided_slice %22 {offsets = [13, 0], sizes = [1, 128], strides = [1, 1]} : vector<19x128xf32> to vector<1x128xf32>
    %34 = vector.extract_strided_slice %22 {offsets = [14, 0], sizes = [1, 128], strides = [1, 1]} : vector<19x128xf32> to vector<1x128xf32>
    %35 = vector.extract_strided_slice %22 {offsets = [15, 0], sizes = [4, 128], strides = [1, 1]} : vector<19x128xf32> to vector<4x128xf32>
    %cst_6 = arith.constant 5.000000e-01 : f32
    %36 = vector.broadcast %cst_6 : f32 to vector<1x128xf32>
    %37 = arith.mulf %36, %25 : vector<1x128xf32>
    %38 = arith.subf %23, %37 : vector<1x128xf32>
    %cst_7 = arith.constant 5.000000e-01 : f32
    %39 = vector.broadcast %cst_7 : f32 to vector<1x128xf32>
    %40 = arith.mulf %39, %25 : vector<1x128xf32>
    %41 = arith.addf %23, %40 : vector<1x128xf32>
    %cst_8 = arith.constant 5.000000e-01 : f32
    %42 = vector.broadcast %cst_8 : f32 to vector<1x128xf32>
    %43 = arith.mulf %42, %26 : vector<1x128xf32>
    %44 = arith.subf %24, %43 : vector<1x128xf32>
    %cst_9 = arith.constant 5.000000e-01 : f32
    %45 = vector.broadcast %cst_9 : f32 to vector<1x128xf32>
    %46 = arith.mulf %45, %26 : vector<1x128xf32>
    %47 = arith.addf %24, %46 : vector<1x128xf32>
    %cst_10 = arith.constant 5.000000e-01 : f32
    %48 = vector.broadcast %cst_10 : f32 to vector<1x128xf32>
    %49 = arith.mulf %48, %31 : vector<1x128xf32>
    %50 = arith.subf %29, %49 : vector<1x128xf32>
    %cst_11 = arith.constant 5.000000e-01 : f32
    %51 = vector.broadcast %cst_11 : f32 to vector<1x128xf32>
    %52 = arith.mulf %51, %31 : vector<1x128xf32>
    %53 = arith.addf %29, %52 : vector<1x128xf32>
    %cst_12 = arith.constant 5.000000e-01 : f32
    %54 = vector.broadcast %cst_12 : f32 to vector<1x128xf32>
    %55 = arith.mulf %54, %32 : vector<1x128xf32>
    %56 = arith.subf %30, %55 : vector<1x128xf32>
    %cst_13 = arith.constant 5.000000e-01 : f32
    %57 = vector.broadcast %cst_13 : f32 to vector<1x128xf32>
    %58 = arith.mulf %57, %32 : vector<1x128xf32>
    %59 = arith.addf %30, %58 : vector<1x128xf32>
    %60 = arith.minimumf %41, %53 : vector<1x128xf32>
    %61 = arith.maximumf %38, %50 : vector<1x128xf32>
    %62 = arith.subf %60, %61 : vector<1x128xf32>
    %cst_14 = arith.constant 0.000000e+00 : f32
    %63 = vector.broadcast %cst_14 : f32 to vector<1x128xf32>
    %64 = arith.maximumf %62, %63 : vector<1x128xf32>
    %65 = arith.minimumf %47, %59 : vector<1x128xf32>
    %66 = arith.maximumf %44, %56 : vector<1x128xf32>
    %67 = arith.subf %65, %66 : vector<1x128xf32>
    %cst_15 = arith.constant 0.000000e+00 : f32
    %68 = vector.broadcast %cst_15 : f32 to vector<1x128xf32>
    %69 = arith.maximumf %67, %68 : vector<1x128xf32>
    %70 = arith.mulf %64, %69 : vector<1x128xf32>
    %71 = arith.mulf %25, %26 : vector<1x128xf32>
    %72 = arith.mulf %31, %32 : vector<1x128xf32>
    %73 = arith.addf %71, %72 : vector<1x128xf32>
    %74 = arith.subf %73, %70 : vector<1x128xf32>
    %cst_16 = arith.constant 1.000000e-07 : f32
    %75 = vector.broadcast %cst_16 : f32 to vector<1x128xf32>
    %76 = arith.maximumf %74, %75 : vector<1x128xf32>
    %77 = arith.divf %70, %76 : vector<1x128xf32>
    %78 = arith.subf %23, %29 : vector<1x128xf32>
    %79 = arith.mulf %78, %78 : vector<1x128xf32>
    %80 = arith.subf %24, %30 : vector<1x128xf32>
    %81 = arith.mulf %80, %80 : vector<1x128xf32>
    %82 = arith.addf %79, %81 : vector<1x128xf32>
    %83 = arith.maximumf %41, %53 : vector<1x128xf32>
    %84 = arith.minimumf %38, %50 : vector<1x128xf32>
    %85 = arith.subf %83, %84 : vector<1x128xf32>
    %86 = arith.maximumf %47, %59 : vector<1x128xf32>
    %87 = arith.minimumf %44, %56 : vector<1x128xf32>
    %88 = arith.subf %86, %87 : vector<1x128xf32>
    %89 = arith.mulf %85, %85 : vector<1x128xf32>
    %90 = arith.mulf %88, %88 : vector<1x128xf32>
    %91 = arith.addf %89, %90 : vector<1x128xf32>
    %92 = arith.subf %28, %34 : vector<1x128xf32>
    %93 = arith.mulf %92, %92 : vector<1x128xf32>
    %cst_17 = arith.constant 0.405284733 : f32
    %94 = vector.broadcast %cst_17 : f32 to vector<1x128xf32>
    %95 = arith.mulf %94, %93 : vector<1x128xf32>
    %cst_18 = arith.constant 1.000000e+00 : f32
    %96 = vector.broadcast %cst_18 : f32 to vector<1x128xf32>
    %97 = arith.subf %96, %77 : vector<1x128xf32>
    %98 = arith.addf %97, %95 : vector<1x128xf32>
    %cst_19 = arith.constant 1.000000e-07 : f32
    %99 = vector.broadcast %cst_19 : f32 to vector<1x128xf32>
    %100 = arith.maximumf %98, %99 : vector<1x128xf32>
    %101 = arith.divf %95, %100 : vector<1x128xf32>
    %cst_20 = arith.constant 1.000000e-07 : f32
    %102 = vector.broadcast %cst_20 : f32 to vector<1x128xf32>
    %103 = arith.maximumf %91, %102 : vector<1x128xf32>
    %104 = arith.divf %82, %103 : vector<1x128xf32>
    %105 = arith.subf %77, %104 : vector<1x128xf32>
    %106 = arith.mulf %101, %95 : vector<1x128xf32>
    %107 = arith.subf %105, %106 : vector<1x128xf32>
    %cst_21 = arith.constant 1.562500e-02 : f32
    %108 = vector.broadcast %cst_21 : f32 to vector<1x128xf32>
    %109 = arith.mulf %31, %108 : vector<1x128xf32>
    %cst_22 = arith.constant 1.562500e-02 : f32
    %110 = vector.broadcast %cst_22 : f32 to vector<1x128xf32>
    %111 = arith.mulf %32, %110 : vector<1x128xf32>
    %112 = arith.mulf %109, %111 : vector<1x128xf32>
    %cst_23 = arith.constant 2.000000e+00 : f32
    %113 = vector.broadcast %cst_23 : f32 to vector<1x128xf32>
    %114 = arith.subf %113, %112 : vector<1x128xf32>
    %cst_24 = arith.constant 1.000000e+00 : f32
    %115 = vector.broadcast %cst_24 : f32 to vector<1x128xf32>
    %116 = arith.subf %115, %107 : vector<1x128xf32>
    %117 = arith.mulf %116, %114 : vector<1x128xf32>
    %118 = arith.mulf %117, %33 : vector<1x128xf32>
    %119 = vector.shape_cast %118 : vector<1x128xf32> to vector<1x1x128xf32>
    %cst_25 = arith.constant dense<0.000000e+00> : vector<1xf32>
    %120 = vector.multi_reduction <add>, %119, %cst_25 [1, 2] : vector<1x1x128xf32> to vector<1xf32>
    %121 = vector.shape_cast %120 : vector<1xf32> to vector<1x1x1xf32>
    %122 = vector.extract %121[0, 0, 0] : f32 from vector<1x1x1xf32>
    %123 = vector.broadcast %122 : f32 to vector<1x1xf32>
    %cst_26 = arith.constant dense<0xFF800000> : vector<128xf32>
    %124 = vector.multi_reduction <maximumf>, %27, %cst_26 [0] : vector<4x128xf32> to vector<128xf32>
    %125 = vector.shape_cast %124 : vector<128xf32> to vector<1x128xf32>
    %126 = vector.broadcast %125 : vector<1x128xf32> to vector<4x128xf32>
    %127 = arith.subf %27, %126 : vector<4x128xf32>
    %128 = math.exp %127 : vector<4x128xf32>
    %cst_27 = arith.constant dense<0.000000e+00> : vector<128xf32>
    %129 = vector.multi_reduction <add>, %128, %cst_27 [0] : vector<4x128xf32> to vector<128xf32>
    %130 = vector.shape_cast %129 : vector<128xf32> to vector<1x128xf32>
    %131 = math.log %130 : vector<1x128xf32>
    %132 = arith.addf %131, %125 : vector<1x128xf32>
    %133 = vector.broadcast %132 : vector<1x128xf32> to vector<4x128xf32>
    %134 = arith.subf %27, %133 : vector<4x128xf32>
    %135 = arith.mulf %35, %134 : vector<4x128xf32>
    %cst_28 = arith.constant dense<0.000000e+00> : vector<128xf32>
    %136 = vector.multi_reduction <add>, %135, %cst_28 [0] : vector<4x128xf32> to vector<128xf32>
    %137 = vector.shape_cast %136 : vector<128xf32> to vector<1x128xf32>
    %cst_29 = arith.constant 0.000000e+00 : f32
    %138 = vector.broadcast %cst_29 : f32 to vector<1x128xf32>
    %139 = arith.subf %138, %137 : vector<1x128xf32>
    %140 = arith.mulf %139, %33 : vector<1x128xf32>
    %141 = vector.shape_cast %140 : vector<1x128xf32> to vector<1x1x128xf32>
    %cst_30 = arith.constant dense<0.000000e+00> : vector<1xf32>
    %142 = vector.multi_reduction <add>, %141, %cst_30 [1, 2] : vector<1x1x128xf32> to vector<1xf32>
    %143 = vector.shape_cast %142 : vector<1xf32> to vector<1x1x1xf32>
    %144 = vector.extract %143[0, 0, 0] : f32 from vector<1x1x1xf32>
    %145 = vector.broadcast %144 : f32 to vector<1x1xf32>
    %c0_31 = arith.constant 0 : index
    %c0_32 = arith.constant 0 : index
    %146 = vector.load %arg2[%c0_31, %c0_32] : memref<8x34xf32, #tpu.memory_space<vmem>>, vector<8x34xf32>
    %147 = vector.extract_strided_slice %146 {offsets = [0, 0], sizes = [8, 32], strides = [1, 1]} : vector<8x34xf32> to vector<8x32xf32>
    %148 = vector.extract_strided_slice %146 {offsets = [0, 32], sizes = [8, 1], strides = [1, 1]} : vector<8x34xf32> to vector<8x1xf32>
    %149 = arith.fptosi %148 : vector<8x1xf32> to vector<8x1xi32>
    %150 = vector.extract_strided_slice %146 {offsets = [0, 33], sizes = [8, 1], strides = [1, 1]} : vector<8x34xf32> to vector<8x1xf32>
    %151 = arith.mulf %147, %147 : vector<8x32xf32>
    %cst_33 = arith.constant dense<0.000000e+00> : vector<8xf32>
    %152 = vector.multi_reduction <add>, %151, %cst_33 [1] : vector<8x32xf32> to vector<8xf32>
    %153 = vector.shape_cast %152 : vector<8xf32> to vector<8x1xf32>
    %cst_34 = arith.constant 1.000000e-24 : f32
    %154 = vector.broadcast %cst_34 : f32 to vector<8x1xf32>
    %155 = arith.maximumf %153, %154 : vector<8x1xf32>
    %156 = math.rsqrt %155 : vector<8x1xf32>
    %157 = vector.broadcast %156 : vector<8x1xf32> to vector<8x32xf32>
    %158 = arith.mulf %147, %157 : vector<8x32xf32>
    %159 = arith.truncf %158 : vector<8x32xf32> to vector<8x32xbf16>
    %c0_35 = arith.constant 0 : index
    %c0_36 = arith.constant 0 : index
    %160 = vector.load %arg3[%c0_35, %c0_36] : memref<32x16xbf16, #tpu.memory_space<vmem>>, vector<32x16xbf16>
    %cst_37 = arith.constant dense<0.000000e+00> : vector<8x16xf32>
    %161 = tpu.matmul %159, %160, %cst_37 {dimension_numbers = #tpu.dot_dimension_numbers<[1], [0], [0], [1], [0, 0, 1, 1], [], []>} : vector<8x32xbf16>, vector<32x16xbf16>, vector<8x16xf32> -> vector<8x16xf32>
    %cst_38 = arith.constant dense<0xFF800000> : vector<8xf32>
    %162 = vector.multi_reduction <maximumf>, %161, %cst_38 [1] : vector<8x16xf32> to vector<8xf32>
    %163 = vector.shape_cast %162 : vector<8xf32> to vector<8x1xf32>
    %164 = vector.broadcast %163 : vector<8x1xf32> to vector<8x16xf32>
    %165 = arith.subf %161, %164 : vector<8x16xf32>
    %166 = math.exp %165 : vector<8x16xf32>
    %cst_39 = arith.constant dense<0.000000e+00> : vector<8xf32>
    %167 = vector.multi_reduction <add>, %166, %cst_39 [1] : vector<8x16xf32> to vector<8xf32>
    %168 = vector.shape_cast %167 : vector<8xf32> to vector<8x1xf32>
    %169 = math.log %168 : vector<8x1xf32>
    %170 = arith.addf %169, %163 : vector<8x1xf32>
    %171 = tpu.iota {dimensions = array<i32: 1>} : vector<8x16xi32>
    %172 = vector.broadcast %149 : vector<8x1xi32> to vector<8x16xi32>
    %173 = arith.cmpi eq, %171, %172 : vector<8x16xi32>
    %cst_40 = arith.constant 0.000000e+00 : f32
    %174 = vector.broadcast %cst_40 : f32 to vector<8x16xf32>
    %175 = arith.select %173, %161, %174 : vector<8x16xi1>, vector<8x16xf32>
    %cst_41 = arith.constant dense<0.000000e+00> : vector<8xf32>
    %176 = vector.multi_reduction <add>, %175, %cst_41 [1] : vector<8x16xf32> to vector<8xf32>
    %177 = vector.shape_cast %176 : vector<8xf32> to vector<8x1xf32>
    %178 = arith.subf %170, %177 : vector<8x1xf32>
    %179 = vector.shape_cast %150 : vector<8x1xf32> to vector<1x8x1xf32>
    %cst_42 = arith.constant dense<0.000000e+00> : vector<1xf32>
    %180 = vector.multi_reduction <add>, %179, %cst_42 [1, 2] : vector<1x8x1xf32> to vector<1xf32>
    %181 = vector.shape_cast %180 : vector<1xf32> to vector<1x1x1xf32>
    %182 = vector.extract %181[0, 0, 0] : f32 from vector<1x1x1xf32>
    %183 = vector.broadcast %182 : f32 to vector<1x1xf32>
    %cst_43 = arith.constant 1.000000e+00 : f32
    %184 = vector.broadcast %cst_43 : f32 to vector<1x1xf32>
    %185 = arith.maximumf %183, %184 : vector<1x1xf32>
    %186 = arith.mulf %178, %150 : vector<8x1xf32>
    %187 = vector.shape_cast %186 : vector<8x1xf32> to vector<1x8x1xf32>
    %cst_44 = arith.constant dense<0.000000e+00> : vector<1xf32>
    %188 = vector.multi_reduction <add>, %187, %cst_44 [1, 2] : vector<1x8x1xf32> to vector<1xf32>
    %189 = vector.shape_cast %188 : vector<1xf32> to vector<1x1x1xf32>
    %190 = vector.extract %189[0, 0, 0] : f32 from vector<1x1x1xf32>
    %191 = vector.broadcast %190 : f32 to vector<1x1xf32>
    %192 = arith.divf %191, %185 : vector<1x1xf32>
    %193 = arith.addf %21, %145 : vector<1x1xf32>
    %194 = arith.addf %193, %123 : vector<1x1xf32>
    %195 = arith.addf %194, %192 : vector<1x1xf32>
    %cst_45 = arith.constant 5.000000e-01 : f32
    %196 = vector.broadcast %cst_45 : f32 to vector<1x1xf32>
    %197 = arith.mulf %195, %196 : vector<1x1xf32>
    %198 = tpu.iota {dimensions = array<i32: 1>} : vector<1x128xi32>
    %c0_i32 = arith.constant 0 : i32
    %199 = vector.broadcast %c0_i32 : i32 to vector<1x128xi32>
    %200 = arith.cmpi eq, %198, %199 : vector<1x128xi32>
    %cst_46 = arith.constant 0.000000e+00 : f32
    %201 = vector.shape_cast %197 : vector<1x1xf32> to vector<1x1xf32>
    %202 = vector.broadcast %201 : vector<1x1xf32> to vector<1x128xf32>
    %203 = vector.broadcast %cst_46 : f32 to vector<1x128xf32>
    %204 = arith.select %200, %202, %203 : vector<1x128xi1>, vector<1x128xf32>
    %c1_i32 = arith.constant 1 : i32
    %205 = vector.broadcast %c1_i32 : i32 to vector<1x128xi32>
    %206 = arith.cmpi eq, %198, %205 : vector<1x128xi32>
    %cst_47 = arith.constant 0.000000e+00 : f32
    %207 = vector.shape_cast %21 : vector<1x1xf32> to vector<1x1xf32>
    %208 = vector.broadcast %207 : vector<1x1xf32> to vector<1x128xf32>
    %209 = vector.broadcast %cst_47 : f32 to vector<1x128xf32>
    %210 = arith.select %206, %208, %209 : vector<1x128xi1>, vector<1x128xf32>
    %211 = arith.addf %204, %210 : vector<1x128xf32>
    %c2_i32 = arith.constant 2 : i32
    %212 = vector.broadcast %c2_i32 : i32 to vector<1x128xi32>
    %213 = arith.cmpi eq, %198, %212 : vector<1x128xi32>
    %cst_48 = arith.constant 0.000000e+00 : f32
    %214 = vector.shape_cast %123 : vector<1x1xf32> to vector<1x1xf32>
    %215 = vector.broadcast %214 : vector<1x1xf32> to vector<1x128xf32>
    %216 = vector.broadcast %cst_48 : f32 to vector<1x128xf32>
    %217 = arith.select %213, %215, %216 : vector<1x128xi1>, vector<1x128xf32>
    %218 = arith.addf %211, %217 : vector<1x128xf32>
    %c3_i32 = arith.constant 3 : i32
    %219 = vector.broadcast %c3_i32 : i32 to vector<1x128xi32>
    %220 = arith.cmpi eq, %198, %219 : vector<1x128xi32>
    %cst_49 = arith.constant 0.000000e+00 : f32
    %221 = vector.shape_cast %145 : vector<1x1xf32> to vector<1x1xf32>
    %222 = vector.broadcast %221 : vector<1x1xf32> to vector<1x128xf32>
    %223 = vector.broadcast %cst_49 : f32 to vector<1x128xf32>
    %224 = arith.select %220, %222, %223 : vector<1x128xi1>, vector<1x128xf32>
    %225 = arith.addf %218, %224 : vector<1x128xf32>
    %c4_i32 = arith.constant 4 : i32
    %226 = vector.broadcast %c4_i32 : i32 to vector<1x128xi32>
    %227 = arith.cmpi eq, %198, %226 : vector<1x128xi32>
    %cst_50 = arith.constant 0.000000e+00 : f32
    %228 = vector.shape_cast %192 : vector<1x1xf32> to vector<1x1xf32>
    %229 = vector.broadcast %228 : vector<1x1xf32> to vector<1x128xf32>
    %230 = vector.broadcast %cst_50 : f32 to vector<1x128xf32>
    %231 = arith.select %227, %229, %230 : vector<1x128xi1>, vector<1x128xf32>
    %232 = arith.addf %225, %231 : vector<1x128xf32>
    %c0_51 = arith.constant 0 : index
    %c0_52 = arith.constant 0 : index
    %233 = vector.load %arg4[%c0_51, %c0_52] : memref<1x128xf32, #tpu.memory_space<vmem>>, vector<1x128xf32>
    tpu.vector_store %arg4[%c0_51, %c0_52], %232 {strides = array<i32>} : memref<1x128xf32, #tpu.memory_space<vmem>>, vector<1x128xf32>,
    return
  }
}

</mosaic_0001>

<llo_original>
// kernel: squeeze.19
$region0: #{squeeze.19}
  %s0 = inlined_call_operand.vmem [shape: f32[2,4,4,2,1], index: 0, kind: input, shape index: {}]
  %s1 = inlined_call_operand.vmem [shape: f32[2,32], index: 1, kind: output, shape index: {}]
  $region1: #{squeeze.19} parent=0
    #allocation0 [shape = 'u8[4096]{0}', space=vmem, size = 0x1000, scoped, tag = 'scoped mem for output reshape']
    #allocation1 [shape = 'u8[32768]{0}', space=vmem, size = 0x8000, scoped, tag = 'scoped mem for input reshape']
    %s3 = sshll.u32 1, 4
    %s4 = ssub.s32 %s3, 1
    %s5 = smul.addr 4, 7
    %s6 = scalar_lea.vmem %s0, %s5
    %v7 = vld [vmem:[%s6] sm:%s4]
    %s8 = scalar_lea.vmem [#allocation1], 56
    %9 = vst [vmem:[%s8] sm:%s4] %v7
    %s10 = smul.addr 4, 6
    %s11 = scalar_lea.vmem %s0, %s10
    %v12 = vld [vmem:[%s11] sm:%s4]
    %s13 = scalar_lea.vmem [#allocation1], 48
    %14 = vst [vmem:[%s13] sm:%s4] %v12
    %s15 = smul.addr 4, 5
    %s16 = scalar_lea.vmem %s0, %s15
    %v17 = vld [vmem:[%s16] sm:%s4]
    %s18 = scalar_lea.vmem [#allocation1], 40
    %19 = vst [vmem:[%s18] sm:%s4] %v17
    %s20 = smul.addr 4, 4
    %s21 = scalar_lea.vmem %s0, %s20
    %v22 = vld [vmem:[%s21] sm:%s4]
    %s23 = scalar_lea.vmem [#allocation1], 32
    %24 = vst [vmem:[%s23] sm:%s4] %v22
    %s25 = smul.addr 4, 3
    %s26 = scalar_lea.vmem %s0, %s25
    %v27 = vld [vmem:[%s26] sm:%s4]
    %s28 = scalar_lea.vmem [#allocation1], 24
    %29 = vst [vmem:[%s28] sm:%s4] %v27
    %s30 = smul.addr 4, 2
    %s31 = scalar_lea.vmem %s0, %s30
    %v32 = vld [vmem:[%s31] sm:%s4]
    %s33 = scalar_lea.vmem [#allocation1], 16
    %34 = vst [vmem:[%s33] sm:%s4] %v32
    %s35 = scalar_lea.vmem %s0, 4
    %v36 = vld [vmem:[%s35] sm:%s4]
    %s37 = scalar_lea.vmem [#allocation1], 8
    %38 = vst [vmem:[%s37] sm:%s4] %v36
    %v39 = vld [vmem:[%s0] sm:%s4]
    %40 = vst [vmem:[#allocation1] sm:%s4] %v39
    %v41 = vld [vmem:[#allocation1] sm:$0x1]
    %s42 = scalar_lea.vmem [#allocation1], 31
    %v43 = vld [vmem:[%s42] sm:$0x2]
    %vm44 = vcmask 1041409
    %v45 = vsel %vm44, %v43, %v41
    %vm46 = vcmask 15360
    %47 = vst.msk [vmem:[#allocation0] sm:$0x3] %vm46, %v45
    %s48 = scalar_lea.vmem [#allocation1], 27
    %v49 = vld [vmem:[%s48] sm:$0x1]
    %s50 = scalar_lea.vmem [#allocation1], 58
    %v51 = vld [vmem:[%s50] sm:$0x2]
    %vm52 = vcmask 1041409
    %v53 = vsel %vm52, %v51, %v49
    %54 = vrot.lane.b32.xlu0 %v53, 30
    %v55 = vpop.permute.xlu0 %54
    %vm56 = vcmask 261360
    %57 = vst.msk [vmem:[#allocation0] sm:$0x3] %vm56, %v55
    %s58 = scalar_lea.vmem [#allocation1], 26
    %v59 = vld [vmem:[%s58] sm:$0x1]
    %s60 = scalar_lea.vmem [#allocation1], 57
    %v61 = vld [vmem:[%s60] sm:$0x2]
    %vm62 = vcmask 1041409
    %v63 = vsel %vm62, %v61, %v59
    %64 = vrot.lane.b32.xlu0 %v63, 28
    %v65 = vpop.permute.xlu0 %64
    %vm66 = vcmask 244960
    %67 = vst.msk [vmem:[#allocation0] sm:$0x3] %vm66, %v65
    %s68 = scalar_lea.vmem [#allocation1], 25
    %v69 = vld [vmem:[%s68] sm:$0x1]
    %s70 = scalar_lea.vmem [#allocation1], 56
    %v71 = vld [vmem:[%s70] sm:$0x2]
    %vm72 = vcmask 1041409
    %v73 = vsel %vm72, %v71, %v69
    %74 = vrot.lane.b32.xlu0 %v73, 26
    %v75 = vpop.permute.xlu0 %74
    %vm76 = vcmask 228560
    %77 = vst.msk [vmem:[#allocation0] sm:$0x3] %vm76, %v75
    %s78 = scalar_lea.vmem [#allocation1], 24
    %v79 = vld [vmem:[%s78] sm:$0x1]
    %s80 = scalar_lea.vmem [#allocation1], 55
    %v81 = vld [vmem:[%s80] sm:$0x2]
    %vm82 = vcmask 1041409
    %v83 = vsel %vm82, %v81, %v79
    %84 = vrot.lane.b32.xlu0 %v83, 24
    %v85 = vpop.permute.xlu0 %84
    %vm86 = vcmask 212160
    %87 = vst.msk [vmem:[#allocation0] sm:$0x3] %vm86, %v85
    %s88 = scalar_lea.vmem [#allocation1], 19
    %v89 = vld [vmem:[%s88] sm:$0x1]
    %s90 = scalar_lea.vmem [#allocation1], 50
    %v91 = vld [vmem:[%s90] sm:$0x2]
    %vm92 = vcmask 1041409
    %v93 = vsel %vm92, %v91, %v89
    %94 = vrot.lane.b32.xlu0 %v93, 22
    %v95 = vpop.permute.xlu0 %94
    %vm96 = vcmask 195760
    %97 = vst.msk [vmem:[#allocation0] sm:$0x3] %vm96, %v95
    %s98 = scalar_lea.vmem [#allocation1], 18
    %v99 = vld [vmem:[%s98] sm:$0x1]
    %s100 = scalar_lea.vmem [#allocation1], 49
    %v101 = vld [vmem:[%s100] sm:$0x2]
    %vm102 = vcmask 1041409
    %v103 = vsel %vm102, %v101, %v99
    %104 = vrot.lane.b32.xlu0 %v103, 20
    %v105 = vpop.permute.xlu0 %104
    %vm106 = vcmask 179360
    %107 = vst.msk [vmem:[#allocation0] sm:$0x3] %vm106, %v105
    %s108 = scalar_lea.vmem [#allocation1], 17
    %v109 = vld [vmem:[%s108] sm:$0x1]
    %s110 = scalar_lea.vmem [#allocation1], 48
    %v111 = vld [vmem:[%s110] sm:$0x2]
    %vm112 = vcmask 1041409
    %v113 = vsel %vm112, %v111, %v109
    %114 = vrot.lane.b32.xlu0 %v113, 18
    %v115 = vpop.permute.xlu0 %114
    %vm116 = vcmask 162960
    %117 = vst.msk [vmem:[#allocation0] sm:$0x3] %vm116, %v115
    %s118 = scalar_lea.vmem [#allocation1], 16
    %v119 = vld [vmem:[%s118] sm:$0x1]
    %s120 = scalar_lea.vmem [#allocation1], 47
    %v121 = vld [vmem:[%s120] sm:$0x2]
    %vm122 = vcmask 1041409
    %v123 = vsel %vm122, %v121, %v119
    %124 = vrot.lane.b32.xlu0 %v123, 16
    %v125 = vpop.permute.xlu0 %124
    %vm126 = vcmask 146560
    %127 = vst.msk [vmem:[#allocation0] sm:$0x3] %vm126, %v125
    %s128 = scalar_lea.vmem [#allocation1], 11
    %v129 = vld [vmem:[%s128] sm:$0x1]
    %s130 = scalar_lea.vmem [#allocation1], 42
    %v131 = vld [vmem:[%s130] sm:$0x2]
    %vm132 = vcmask 1041409
    %v133 = vsel %vm132, %v131, %v129
    %134 = vrot.lane.b32.xlu0 %v133, 14
    %v135 = vpop.permute.xlu0 %134
    %vm136 = vcmask 130160
    %137 = vst.msk [vmem:[#allocation0] sm:$0x3] %vm136, %v135
    %s138 = scalar_lea.vmem [#allocation1], 10
    %v139 = vld [vmem:[%s138] sm:$0x1]
    %s140 = scalar_lea.vmem [#allocation1], 41
    %v141 = vld [vmem:[%s140] sm:$0x2]
    %vm142 = vcmask 1041409
    %v143 = vsel %vm142, %v141, %v139
    %144 = vrot.lane.b32.xlu0 %v143, 12
    %v145 = vpop.permute.xlu0 %144
    %vm146 = vcmask 113760
    %147 = vst.msk [vmem:[#allocation0] sm:$0x3] %vm146, %v145
    %s148 = scalar_lea.vmem [#allocation1], 9
    %v149 = vld [vmem:[%s148] sm:$0x1]
    %s150 = scalar_lea.vmem [#allocation1], 40
    %v151 = vld [vmem:[%s150] sm:$0x2]
    %vm152 = vcmask 1041409
    %v153 = vsel %vm152, %v151, %v149
    %154 = vrot.lane.b32.xlu0 %v153, 10
    %v155 = vpop.permute.xlu0 %154
    %vm156 = vcmask 97360
    %157 = vst.msk [vmem:[#allocation0] sm:$0x3] %vm156, %v155
    %s158 = scalar_lea.vmem [#allocation1], 8
    %v159 = vld [vmem:[%s158] sm:$0x1]
    %s160 = scalar_lea.vmem [#allocation1], 39
    %v161 = vld [vmem:[%s160] sm:$0x2]
    %vm162 = vcmask 1041409
    %v163 = vsel %vm162, %v161, %v159
    %164 = vrot.lane.b32.xlu0 %v163, 8
    %v165 = vpop.permute.xlu0 %164
    %vm166 = vcmask 80960
    %167 = vst.msk [vmem:[#allocation0] sm:$0x3] %vm166, %v165
    %s168 = scalar_lea.vmem [#allocation1], 3
    %v169 = vld [vmem:[%s168] sm:$0x1]
    %s170 = scalar_lea.vmem [#allocation1], 34
    %v171 = vld [vmem:[%s170] sm:$0x2]
    %vm172 = vcmask 1041409
    %v173 = vsel %vm172, %v171, %v169
    %174 = vrot.lane.b32.xlu0 %v173, 6
    %v175 = vpop.permute.xlu0 %174
    %vm176 = vcmask 64560
    %177 = vst.msk [vmem:[#allocation0] sm:$0x3] %vm176, %v175
    %s178 = scalar_lea.vmem [#allocation1], 2
    %v179 = vld [vmem:[%s178] sm:$0x1]
    %s180 = scalar_lea.vmem [#allocation1], 33
    %v181 = vld [vmem:[%s180] sm:$0x2]
    %vm182 = vcmask 1041409
    %v183 = vsel %vm182, %v181, %v179
    %184 = vrot.lane.b32.xlu0 %v183, 4
    %v185 = vpop.permute.xlu0 %184
    %vm186 = vcmask 48160
    %187 = vst.msk [vmem:[#allocation0] sm:$0x3] %vm186, %v185
    %s188 = scalar_lea.vmem [#allocation1], 1
    %v189 = vld [vmem:[%s188] sm:$0x1]
    %s190 = scalar_lea.vmem [#allocation1], 32
    %v191 = vld [vmem:[%s190] sm:$0x2]
    %vm192 = vcmask 1041409
    %v193 = vsel %vm192, %v191, %v189
    %194 = vrot.lane.b32.xlu0 %v193, 2
    %v195 = vpop.permute.xlu0 %194
    %vm196 = vcmask 31760
    %197 = vst.msk [vmem:[#allocation0] sm:$0x3] %vm196, %v195
    %s199 = sshll.u32 1, 2
    %s200 = ssub.s32 %s199, 1
    %v202 = vld [vmem:[#allocation0] sm:%s200]
    %s203 = sshll.u32 1, 2
    %s204 = ssub.s32 %s203, 1
    %205 = vst [vmem:[%s1] sm:%s204] %v202

// kernel: squeeze.14
$region0: #{squeeze.14}
  %s0 = inlined_call_operand.vmem [shape: f32[2,8,8,2,1], index: 0, kind: input, shape index: {}]
  %s1 = inlined_call_operand.vmem [shape: f32[2,128], index: 1, kind: output, shape index: {}]
  $region1: #{squeeze.14} parent=0
    #allocation0 [shape = 'u8[4096]{0}', space=vmem, size = 0x1000, scoped, tag = 'scoped mem for output reshape']
    %v2 = vld [vmem:[%s0] sm:$0x1]
    %s3 = scalar_lea.vmem %s0, 63
    %v4 = vld [vmem:[%s3] sm:$0x2]
    %vm5 = vcmask 1041409
    %v6 = vsel %vm5, %v4, %v2
    %vm7 = vcmask 15360
    %8 = vst.msk [vmem:[#allocation0] sm:$0x3] %vm7, %v6
    %s9 = scalar_lea.vmem %s0, 63
    %v10 = vld [vmem:[%s9] sm:$0x1]
    %s11 = scalar_lea.vmem %s0, 126
    %v12 = vld [vmem:[%s11] sm:$0x2]
    %vm13 = vcmask 1041409
    %v14 = vsel %vm13, %v12, %v10
    %15 = vrot.lane.b32.xlu0 %v14, 126
    %v16 = vpop.permute.xlu0 %15
    %vm17 = vcmask 1048560
    %18 = vst.msk [vmem:[#allocation0] sm:$0x3] %vm17, %v16
    %s19 = scalar_lea.vmem %s0, 62
    %v20 = vld [vmem:[%s19] sm:$0x1]
    %s21 = scalar_lea.vmem %s0, 125
    %v22 = vld [vmem:[%s21] sm:$0x2]
    %vm23 = vcmask 1041409
    %v24 = vsel %vm23, %v22, %v20
    %25 = vrot.lane.b32.xlu0 %v24, 124
    %v26 = vpop.permute.xlu0 %25
    %vm27 = vcmask 1032160
    %28 = vst.msk [vmem:[#allocation0] sm:$0x3] %vm27, %v26
    %s29 = scalar_lea.vmem %s0, 61
    %v30 = vld [vmem:[%s29] sm:$0x1]
    %s31 = scalar_lea.vmem %s0, 124
    %v32 = vld [vmem:[%s31] sm:$0x2]
    %vm33 = vcmask 1041409
    %v34 = vsel %vm33, %v32, %v30
    %35 = vrot.lane.b32.xlu0 %v34, 122
    %v36 = vpop.permute.xlu0 %35
    %vm37 = vcmask 1015760
    %38 = vst.msk [vmem:[#allocation0] sm:$0x3] %vm37, %v36
    %s39 = scalar_lea.vmem %s0, 60
    %v40 = vld [vmem:[%s39] sm:$0x1]
    %s41 = scalar_lea.vmem %s0, 123
    %v42 = vld [vmem:[%s41] sm:$0x2]
    %vm43 = vcmask 1041409
    %v44 = vsel %vm43, %v42, %v40
    %45 = vrot.lane.b32.xlu0 %v44, 120
    %v46 = vpop.permute.xlu0 %45
    %vm47 = vcmask 999360
    %48 = vst.msk [vmem:[#allocation0] sm:$0x3] %vm47, %v46
    %s49 = scalar_lea.vmem %s0, 59
    %v50 = vld [vmem:[%s49] sm:$0x1]
    %s51 = scalar_lea.vmem %s0, 122
    %v52 = vld [vmem:[%s51] sm:$0x2]
    %vm53 = vcmask 1041409
    %v54 = vsel %vm53, %v52, %v50
    %55 = vrot.lane.b32.xlu0 %v54, 118
    %v56 = vpop.permute.xlu0 %55
    %vm57 = vcmask 982960
    %58 = vst.msk [vmem:[#allocation0] sm:$0x3] %vm57, %v56
    %s59 = scalar_lea.vmem %s0, 58
    %v60 = vld [vmem:[%s59] sm:$0x1]
    %s61 = scalar_lea.vmem %s0, 121
    %v62 = vld [vmem:[%s61] sm:$0x2]
    %vm63 = vcmask 1041409
    %v64 = vsel %vm63, %v62, %v60
    %65 = vrot.lane.b32.xlu0 %v64, 116
    %v66 = vpop.permute.xlu0 %65
    %vm67 = vcmask 966560
    %68 = vst.msk [vmem:[#allocation0] sm:$0x3] %vm67, %v66
    %s69 = scalar_lea.vmem %s0, 57
    %v70 = vld [vmem:[%s69] sm:$0x1]
    %s71 = scalar_lea.vmem %s0, 120
    %v72 = vld [vmem:[%s71] sm:$0x2]
    %vm73 = vcmask 1041409
    %v74 = vsel %vm73, %v72, %v70
    %75 = vrot.lane.b32.xlu0 %v74, 114
    %v76 = vpop.permute.xlu0 %75
    %vm77 = vcmask 950160
    %78 = vst.msk [vmem:[#allocation0] sm:$0x3] %vm77, %v76
    %s79 = scalar_lea.vmem %s0, 56
    %v80 = vld [vmem:[%s79] sm:$0x1]
    %s81 = scalar_lea.vmem %s0, 119
    %v82 = vld [vmem:[%s81] sm:$0x2]
    %vm83 = vcmask 1041409
    %v84 = vsel %vm83, %v82, %v80
    %85 = vrot.lane.b32.xlu0 %v84, 112
    %v86 = vpop.permute.xlu0 %85
    %vm87 = vcmask 933760
    %88 = vst.msk [vmem:[#allocation0] sm:$0x3] %vm87, %v86
    %s89 = scalar_lea.vmem %s0, 55
    %v90 = vld [vmem:[%s89] sm:$0x1]
    %s91 = scalar_lea.vmem %s0, 118
    %v92 = vld [vmem:[%s91] sm:$0x2]
    %vm93 = vcmask 1041409
    %v94 = vsel %vm93, %v92, %v90
    %95 = vrot.lane.b32.xlu0 %v94, 110
    %v96 = vpop.permute.xlu0 %95
    %vm97 = vcmask 917360
    %98 = vst.msk [vmem:[#allocation0] sm:$0x3] %vm97, %v96
    %s99 = scalar_lea.vmem %s0, 54
    %v100 = vld [vmem:[%s99] sm:$0x1]
    %s101 = scalar_lea.vmem %s0, 117
    %v102 = vld [vmem:[%s101] sm:$0x2]
    %vm103 = vcmask 1041409
    %v104 = vsel %vm103, %v102, %v100
    %105 = vrot.lane.b32.xlu0 %v104, 108
    %v106 = vpop.permute.xlu0 %105
    %vm107 = vcmask 900960
    %108 = vst.msk [vmem:[#allocation0] sm:$0x3] %vm107, %v106
    %s109 = scalar_lea.vmem %s0, 53
    %v110 = vld [vmem:[%s109] sm:$0x1]
    %s111 = scalar_lea.vmem %s0, 116
    %v112 = vld [vmem:[%s111] sm:$0x2]
    %vm113 = vcmask 1041409
    %v114 = vsel %vm113, %v112, %v110
    %115 = vrot.lane.b32.xlu0 %v114, 106
    %v116 = vpop.permute.xlu0 %115
    %vm117 = vcmask 884560
    %118 = vst.msk [vmem:[#allocation0] sm:$0x3] %vm117, %v116
    %s119 = scalar_lea.vmem %s0, 52
    %v120 = vld [vmem:[%s119] sm:$0x1]
    %s121 = scalar_lea.vmem %s0, 115
    %v122 = vld [vmem:[%s121] sm:$0x2]
    %vm123 = vcmask 1041409
    %v124 = vsel %vm123, %v122, %v120
    %125 = vrot.lane.b32.xlu0 %v124, 104
    %v126 = vpop.permute.xlu0 %125
    %vm127 = vcmask 868160
    %128 = vst.msk [vmem:[#allocation0] sm:$0x3] %vm127, %v126
    %s129 = scalar_lea.vmem %s0, 51
    %v130 = vld [vmem:[%s129] sm:$0x1]
    %s131 = scalar_lea.vmem %s0, 114
    %v132 = vld [vmem:[%s131] sm:$0x2]
    %vm133 = vcmask 1041409
    %v134 = vsel %vm133, %v132, %v130
    %135 = vrot.lane.b32.xlu0 %v134, 102
    %v136 = vpop.permute.xlu0 %135
    %vm137 = vcmask 851760
    %138 = vst.msk [vmem:[#allocation0] sm:$0x3] %vm137, %v136
    %s139 = scalar_lea.vmem %s0, 50
    %v140 = vld [vmem:[%s139] sm:$0x1]
    %s141 = scalar_lea.vmem %s0, 113
    %v142 = vld [vmem:[%s141] sm:$0x2]
    %vm143 = vcmask 1041409
    %v144 = vsel %vm143, %v142, %v140
    %145 = vrot.lane.b32.xlu0 %v144, 100
    %v146 = vpop.permute.xlu0 %145
    %vm147 = vcmask 835360
    %148 = vst.msk [vmem:[#allocation0] sm:$0x3] %vm147, %v146
    %s149 = scalar_lea.vmem %s0, 49
    %v150 = vld [vmem:[%s149] sm:$0x1]
    %s151 = scalar_lea.vmem %s0, 112
    %v152 = vld [vmem:[%s151] sm:$0x2]
    %vm153 = vcmask 1041409
    %v154 = vsel %vm153, %v152, %v150
    %155 = vrot.lane.b32.xlu0 %v154, 98
    %v156 = vpop.permute.xlu0 %155
    %vm157 = vcmask 818960
    %158 = vst.msk [vmem:[#allocation0] sm:$0x3] %vm157, %v156
    %s159 = scalar_lea.vmem %s0, 48
    %v160 = vld [vmem:[%s159] sm:$0x1]
    %s161 = scalar_lea.vmem %s0, 111
    %v162 = vld [vmem:[%s161] sm:$0x2]
    %vm163 = vcmask 1041409
    %v164 = vsel %vm163, %v162, %v160
    %165 = vrot.lane.b32.xlu0 %v164, 96
    %v166 = vpop.permute.xlu0 %165
    %vm167 = vcmask 802560
    %168 = vst.msk [vmem:[#allocation0] sm:$0x3] %vm167, %v166
    %s169 = scalar_lea.vmem %s0, 47
    %v170 = vld [vmem:[%s169] sm:$0x1]
    %s171 = scalar_lea.vmem %s0, 110
    %v172 = vld [vmem:[%s171] sm:$0x2]
    %vm173 = vcmask 1041409
    %v174 = vsel %vm173, %v172, %v170
    %175 = vrot.lane.b32.xlu0 %v174, 94
    %v176 = vpop.permute.xlu0 %175
    %vm177 = vcmask 786160
    %178 = vst.msk [vmem:[#allocation0] sm:$0x3] %vm177, %v176
    %s179 = scalar_lea.vmem %s0, 46
    %v180 = vld [vmem:[%s179] sm:$0x1]
    %s181 = scalar_lea.vmem %s0, 109
    %v182 = vld [vmem:[%s181] sm:$0x2]
    %vm183 = vcmask 1041409
    %v184 = vsel %vm183, %v182, %v180
    %185 = vrot.lane.b32.xlu0 %v184, 92
    %v186 = vpop.permute.xlu0 %185
    %vm187 = vcmask 769760
    %188 = vst.msk [vmem:[#allocation0] sm:$0x3] %vm187, %v186
    %s189 = scalar_lea.vmem %s0, 45
    %v190 = vld [vmem:[%s189] sm:$0x1]
    %s191 = scalar_lea.vmem %s0, 108
    %v192 = vld [vmem:[%s191] sm:$0x2]
    %vm193 = vcmask 1041409
    %v194 = vsel %vm193, %v192, %v190
    %195 = vrot.lane.b32.xlu0 %v194, 90
    %v196 = vpop.permute.xlu0 %195
    %vm197 = vcmask 753360
    %198 = vst.msk [vmem:[#allocation0] sm:$0x3] %vm197, %v196
    %s199 = scalar_lea.vmem %s0, 44
    %v200 = vld [vmem:[%s199] sm:$0x1]
    %s201 = scalar_lea.vmem %s0, 107
    %v202 = vld [vmem:[%s201] sm:$0x2]
    %vm203 = vcmask 1041409
    %v204 = vsel %vm203, %v202, %v200
    %205 = vrot.lane.b32.xlu0 %v204, 88
    %v206 = vpop.permute.xlu0 %205
    %vm207 = vcmask 736960
    %208 = vst.msk [vmem:[#allocation0] sm:$0x3] %vm207, %v206
    %s209 = scalar_lea.vmem %s0, 43
    %v210 = vld [vmem:[%s209] sm:$0x1]
    %s211 = scalar_lea.vmem %s0, 106
    %v212 = vld [vmem:[%s211] sm:$0x2]
    %vm213 = vcmask 1041409
    %v214 = vsel %vm213, %v212, %v210
    %215 = vrot.lane.b32.xlu0 %v214, 86
    %v216 = vpop.permute.xlu0 %215
    %vm217 = vcmask 720560
    %218 = vst.msk [vmem:[#allocation0] sm:$0x3] %vm217, %v216
    %s219 = scalar_lea.vmem %s0, 42
    %v220 = vld [vmem:[%s219] sm:$0x1]
    %s221 = scalar_lea.vmem %s0, 105
    %v222 = vld [vmem:[%s221] sm:$0x2]
    %vm223 = vcmask 1041409
    %v224 = vsel %vm223, %v222, %v220
    %225 = vrot.lane.b32.xlu0 %v224, 84
    %v226 = vpop.permute.xlu0 %225
    %vm227 = vcmask 704160
    %228 = vst.msk [vmem:[#allocation0] sm:$0x3] %vm227, %v226
    %s229 = scalar_lea.vmem %s0, 41
    %v230 = vld [vmem:[%s229] sm:$0x1]
    %s231 = scalar_lea.vmem %s0, 104
    %v232 = vld [vmem:[%s231] sm:$0x2]
    %vm233 = vcmask 1041409
    %v234 = vsel %vm233, %v232, %v230
    %235 = vrot.lane.b32.xlu0 %v234, 82
    %v236 = vpop.permute.xlu0 %235
    %vm237 = vcmask 687760
    %238 = vst.msk [vmem:[#allocation0] sm:$0x3] %vm237, %v236
    %s239 = scalar_lea.vmem %s0, 40
    %v240 = vld [vmem:[%s239] sm:$0x1]
    %s241 = scalar_lea.vmem %s0, 103
    %v242 = vld [vmem:[%s241] sm:$0x2]
    %vm243 = vcmask 1041409
    %v244 = vsel %vm243, %v242, %v240
    %245 = vrot.lane.b32.xlu0 %v244, 80
    %v246 = vpop.permute.xlu0 %245
    %vm247 = vcmask 671360
    %248 = vst.msk [vmem:[#allocation0] sm:$0x3] %vm247, %v246
    %s249 = scalar_lea.vmem %s0, 39
    %v250 = vld [vmem:[%s249] sm:$0x1]
    %s251 = scalar_lea.vmem %s0, 102
    %v252 = vld [vmem:[%s251] sm:$0x2]
    %vm253 = vcmask 1041409
    %v254 = vsel %vm253, %v252, %v250
    %255 = vrot.lane.b32.xlu0 %v254, 78
    %v256 = vpop.permute.xlu0 %255
    %vm257 = vcmask 654960
    %258 = vst.msk [vmem:[#allocation0] sm:$0x3] %vm257, %v256
    %s259 = scalar_lea.vmem %s0, 38
    %v260 = vld [vmem:[%s259] sm:$0x1]
    %s261 = scalar_lea.vmem %s0, 101
    %v262 = vld [vmem:[%s261] sm:$0x2]
    %vm263 = vcmask 1041409
    %v264 = vsel %vm263, %v262, %v260
    %265 = vrot.lane.b32.xlu0 %v264, 76
    %v266 = vpop.permute.xlu0 %265
    %vm267 = vcmask 638560
    %268 = vst.msk [vmem:[#allocation0] sm:$0x3] %vm267, %v266
    %s269 = scalar_lea.vmem %s0, 37
    %v270 = vld [vmem:[%s269] sm:$0x1]
    %s271 = scalar_lea.vmem %s0, 100
    %v272 = vld [vmem:[%s271] sm:$0x2]
    %vm273 = vcmask 1041409
    %v274 = vsel %vm273, %v272, %v270
    %275 = vrot.lane.b32.xlu0 %v274, 74
    %v276 = vpop.permute.xlu0 %275
    %vm277 = vcmask 622160
    %278 = vst.msk [vmem:[#allocation0] sm:$0x3] %vm277, %v276
    %s279 = scalar_lea.vmem %s0, 36
    %v280 = vld [vmem:[%s279] sm:$0x1]
    %s281 = scalar_lea.vmem %s0, 99
    %v282 = vld [vmem:[%s281] sm:$0x2]
    %vm283 = vcmask 1041409
    %v284 = vsel %vm283, %v282, %v280
    %285 = vrot.lane.b32.xlu0 %v284, 72
    %v286 = vpop.permute.xlu0 %285
    %vm287 = vcmask 605760
    %288 = vst.msk [vmem:[#allocation0] sm:$0x3] %vm287, %v286
    %s289 = scalar_lea.vmem %s0, 35
    %v290 = vld [vmem:[%s289] sm:$0x1]
    %s291 = scalar_lea.vmem %s0, 98
    %v292 = vld [vmem:[%s291] sm:$0x2]
    %vm293 = vcmask 1041409
    %v294 = vsel %vm293, %v292, %v290
    %295 = vrot.lane.b32.xlu0 %v294, 70
    %v296 = vpop.permute.xlu0 %295
    %vm297 = vcmask 589360
    %298 = vst.msk [vmem:[#allocation0] sm:$0x3] %vm297, %v296
    %s299 = scalar_lea.vmem %s0, 34
    %v300 = vld [vmem:[%s299] sm:$0x1]
    %s301 = scalar_lea.vmem %s0, 97
    %v302 = vld [vmem:[%s301] sm:$0x2]
    %vm303 = vcmask 1041409
    %v304 = vsel %vm303, %v302, %v300
    %305 = vrot.lane.b32.xlu0 %v304, 68
    %v306 = vpop.permute.xlu0 %305
    %vm307 = vcmask 572960
    %308 = vst.msk [vmem:[#allocation0] sm:$0x3] %vm307, %v306
    %s309 = scalar_lea.vmem %s0, 33
    %v310 = vld [vmem:[%s309] sm:$0x1]
    %s311 = scalar_lea.vmem %s0, 96
    %v312 = vld [vmem:[%s311] sm:$0x2]
    %vm313 = vcmask 1041409
    %v314 = vsel %vm313, %v312, %v310
    %315 = vrot.lane.b32.xlu0 %v314, 66
    %v316 = vpop.permute.xlu0 %315
    %vm317 = vcmask 556560
    %318 = vst.msk [vmem:[#allocation0] sm:$0x3] %vm317, %v316
    %s319 = scalar_lea.vmem %s0, 32
    %v320 = vld [vmem:[%s319] sm:$0x1]
    %s321 = scalar_lea.vmem %s0, 95
    %v322 = vld [vmem:[%s321] sm:$0x2]
    %vm323 = vcmask 1041409
    %v324 = vsel %vm323, %v322, %v320
    %325 = vrot.lane.b32.xlu0 %v324, 64
    %v326 = vpop.permute.xlu0 %325
    %vm327 = vcmask 540160
    %328 = vst.msk [vmem:[#allocation0] sm:$0x3] %vm327, %v326
    %s329 = scalar_lea.vmem %s0, 31
    %v330 = vld [vmem:[%s329] sm:$0x1]
    %s331 = scalar_lea.vmem %s0, 94
    %v332 = vld [vmem:[%s331] sm:$0x2]
    %vm333 = vcmask 1041409
    %v334 = vsel %vm333, %v332, %v330
    %335 = vrot.lane.b32.xlu0 %v334, 62
    %v336 = vpop.permute.xlu0 %335
    %vm337 = vcmask 523760
    %338 = vst.msk [vmem:[#allocation0] sm:$0x3] %vm337, %v336
    %s339 = scalar_lea.vmem %s0, 30
    %v340 = vld [vmem:[%s339] sm:$0x1]
    %s341 = scalar_lea.vmem %s0, 93
    %v342 = vld [vmem:[%s341] sm:$0x2]
    %vm343 = vcmask 1041409
    %v344 = vsel %vm343, %v342, %v340
    %345 = vrot.lane.b32.xlu0 %v344, 60
    %v346 = vpop.permute.xlu0 %345
    %vm347 = vcmask 507360
    %348 = vst.msk [vmem:[#allocation0] sm:$0x3] %vm347, %v346
    %s349 = scalar_lea.vmem %s0, 29
    %v350 = vld [vmem:[%s349] sm:$0x1]
    %s351 = scalar_lea.vmem %s0, 92
    %v352 = vld [vmem:[%s351] sm:$0x2]
    %vm353 = vcmask 1041409
    %v354 = vsel %vm353, %v352, %v350
    %355 = vrot.lane.b32.xlu0 %v354, 58
    %v356 = vpop.permute.xlu0 %355
    %vm357 = vcmask 490960
    %358 = vst.msk [vmem:[#allocation0] sm:$0x3] %vm357, %v356
    %s359 = scalar_lea.vmem %s0, 28
    %v360 = vld [vmem:[%s359] sm:$0x1]
    %s361 = scalar_lea.vmem %s0, 91
    %v362 = vld [vmem:[%s361] sm:$0x2]
    %vm363 = vcmask 1041409
    %v364 = vsel %vm363, %v362, %v360
    %365 = vrot.lane.b32.xlu0 %v364, 56
    %v366 = vpop.permute.xlu0 %365
    %vm367 = vcmask 474560
    %368 = vst.msk [vmem:[#allocation0] sm:$0x3] %vm367, %v366
    %s369 = scalar_lea.vmem %s0, 27
    %v370 = vld [vmem:[%s369] sm:$0x1]
    %s371 = scalar_lea.vmem %s0, 90
    %v372 = vld [vmem:[%s371] sm:$0x2]
    %vm373 = vcmask 1041409
    %v374 = vsel %vm373, %v372, %v370
    %375 = vrot.lane.b32.xlu0 %v374, 54
    %v376 = vpop.permute.xlu0 %375
    %vm377 = vcmask 458160
    %378 = vst.msk [vmem:[#allocation0] sm:$0x3] %vm377, %v376
    %s379 = scalar_lea.vmem %s0, 26
    %v380 = vld [vmem:[%s379] sm:$0x1]
    %s381 = scalar_lea.vmem %s0, 89
    %v382 = vld [vmem:[%s381] sm:$0x2]
    %vm383 = vcmask 1041409
    %v384 = vsel %vm383, %v382, %v380
    %385 = vrot.lane.b32.xlu0 %v384, 52
    %v386 = vpop.permute.xlu0 %385
    %vm387 = vcmask 441760
    %388 = vst.msk [vmem:[#allocation0] sm:$0x3] %vm387, %v386
    %s389 = scalar_lea.vmem %s0, 25
    %v390 = vld [vmem:[%s389] sm:$0x1]
    %s391 = scalar_lea.vmem %s0, 88
    %v392 = vld [vmem:[%s391] sm:$0x2]
    %vm393 = vcmask 1041409
    %v394 = vsel %vm393, %v392, %v390
    %395 = vrot.lane.b32.xlu0 %v394, 50
    %v396 = vpop.permute.xlu0 %395
    %vm397 = vcmask 425360
    %398 = vst.msk [vmem:[#allocation0] sm:$0x3] %vm397, %v396
    %s399 = scalar_lea.vmem %s0, 24
    %v400 = vld [vmem:[%s399] sm:$0x1]
    %s401 = scalar_lea.vmem %s0, 87
    %v402 = vld [vmem:[%s401] sm:$0x2]
    %vm403 = vcmask 1041409
    %v404 = vsel %vm403, %v402, %v400
    %405 = vrot.lane.b32.xlu0 %v404, 48
    %v406 = vpop.permute.xlu0 %405
    %vm407 = vcmask 408960
    %408 = vst.msk [vmem:[#allocation0] sm:$0x3] %vm407, %v406
    %s409 = scalar_lea.vmem %s0, 23
    %v410 = vld [vmem:[%s409] sm:$0x1]
    %s411 = scalar_lea.vmem %s0, 86
    %v412 = vld [vmem:[%s411] sm:$0x2]
    %vm413 = vcmask 1041409
    %v414 = vsel %vm413, %v412, %v410
    %415 = vrot.lane.b32.xlu0 %v414, 46
    %v416 = vpop.permute.xlu0 %415
    %vm417 = vcmask 392560
    %418 = vst.msk [vmem:[#allocation0] sm:$0x3] %vm417, %v416
    %s419 = scalar_lea.vmem %s0, 22
    %v420 = vld [vmem:[%s419] sm:$0x1]
    %s421 = scalar_lea.vmem %s0, 85
    %v422 = vld [vmem:[%s421] sm:$0x2]
    %vm423 = vcmask 1041409
    %v424 = vsel %vm423, %v422, %v420
    %425 = vrot.lane.b32.xlu0 %v424, 44
    %v426 = vpop.permute.xlu0 %425
    %vm427 = vcmask 376160
    %428 = vst.msk [vmem:[#allocation0] sm:$0x3] %vm427, %v426
    %s429 = scalar_lea.vmem %s0, 21
    %v430 = vld [vmem:[%s429] sm:$0x1]
    %s431 = scalar_lea.vmem %s0, 84
    %v432 = vld [vmem:[%s431] sm:$0x2]
    %vm433 = vcmask 1041409
    %v434 = vsel %vm433, %v432, %v430
    %435 = vrot.lane.b32.xlu0 %v434, 42
    %v436 = vpop.permute.xlu0 %435
    %vm437 = vcmask 359760
    %438 = vst.msk [vmem:[#allocation0] sm:$0x3] %vm437, %v436
    %s439 = scalar_lea.vmem %s0, 20
    %v440 = vld [vmem:[%s439] sm:$0x1]
    %s441 = scalar_lea.vmem %s0, 83
    %v442 = vld [vmem:[%s441] sm:$0x2]
    %vm443 = vcmask 1041409
    %v444 = vsel %vm443, %v442, %v440
    %445 = vrot.lane.b32.xlu0 %v444, 40
    %v446 = vpop.permute.xlu0 %445
    %vm447 = vcmask 343360
    %448 = vst.msk [vmem:[#allocation0] sm:$0x3] %vm447, %v446
    %s449 = scalar_lea.vmem %s0, 19
    %v450 = vld [vmem:[%s449] sm:$0x1]
    %s451 = scalar_lea.vmem %s0, 82
    %v452 = vld [vmem:[%s451] sm:$0x2]
    %vm453 = vcmask 1041409
    %v454 = vsel %vm453, %v452, %v450
    %455 = vrot.lane.b32.xlu0 %v454, 38
    %v456 = vpop.permute.xlu0 %455
    %vm457 = vcmask 326960
    %458 = vst.msk [vmem:[#allocation0] sm:$0x3] %vm457, %v456
    %s459 = scalar_lea.vmem %s0, 18
    %v460 = vld [vmem:[%s459] sm:$0x1]
    %s461 = scalar_lea.vmem %s0, 81
    %v462 = vld [vmem:[%s461] sm:$0x2]
    %vm463 = vcmask 1041409
    %v464 = vsel %vm463, %v462, %v460
    %465 = vrot.lane.b32.xlu0 %v464, 36
    %v466 = vpop.permute.xlu0 %465
    %vm467 = vcmask 310560
    %468 = vst.msk [vmem:[#allocation0] sm:$0x3] %vm467, %v466
    %s469 = scalar_lea.vmem %s0, 17
    %v470 = vld [vmem:[%s469] sm:$0x1]
    %s471 = scalar_lea.vmem %s0, 80
    %v472 = vld [vmem:[%s471] sm:$0x2]
    %vm473 = vcmask 1041409
    %v474 = vsel %vm473, %v472, %v470
    %475 = vrot.lane.b32.xlu0 %v474, 34
    %v476 = vpop.permute.xlu0 %475
    %vm477 = vcmask 294160
    %478 = vst.msk [vmem:[#allocation0] sm:$0x3] %vm477, %v476
    %s479 = scalar_lea.vmem %s0, 16
    %v480 = vld [vmem:[%s479] sm:$0x1]
    %s481 = scalar_lea.vmem %s0, 79
    %v482 = vld [vmem:[%s481] sm:$0x2]
    %vm483 = vcmask 1041409
    %v484 = vsel %vm483, %v482, %v480
    %485 = vrot.lane.b32.xlu0 %v484, 32
    %v486 = vpop.permute.xlu0 %485
    %vm487 = vcmask 277760
    %488 = vst.msk [vmem:[#allocation0] sm:$0x3] %vm487, %v486
    %s489 = scalar_lea.vmem %s0, 15
    %v490 = vld [vmem:[%s489] sm:$0x1]
    %s491 = scalar_lea.vmem %s0, 78
    %v492 = vld [vmem:[%s491] sm:$0x2]
    %vm493 = vcmask 1041409
    %v494 = vsel %vm493, %v492, %v490
    %495 = vrot.lane.b32.xlu0 %v494, 30
    %v496 = vpop.permute.xlu0 %495
    %vm497 = vcmask 261360
    %498 = vst.msk [vmem:[#allocation0] sm:$0x3] %vm497, %v496
    %s499 = scalar_lea.vmem %s0, 14
    %v500 = vld [vmem:[%s499] sm:$0x1]
    %s501 = scalar_lea.vmem %s0, 77
    %v502 = vld [vmem:[%s501] sm:$0x2]
    %vm503 = vcmask 1041409
    %v504 = vsel %vm503, %v502, %v500
    %505 = vrot.lane.b32.xlu0 %v504, 28
    %v506 = vpop.permute.xlu0 %505
    %vm507 = vcmask 244960
    %508 = vst.msk [vmem:[#allocation0] sm:$0x3] %vm507, %v506
    %s509 = scalar_lea.vmem %s0, 13
    %v510 = vld [vmem:[%s509] sm:$0x1]
    %s511 = scalar_lea.vmem %s0, 76
    %v512 = vld [vmem:[%s511] sm:$0x2]
    %vm513 = vcmask 1041409
    %v514 = vsel %vm513, %v512, %v510
    %515 = vrot.lane.b32.xlu0 %v514, 26
    %v516 = vpop.permute.xlu0 %515
    %vm517 = vcmask 228560
    %518 = vst.msk [vmem:[#allocation0] sm:$0x3] %vm517, %v516
    %s519 = scalar_lea.vmem %s0, 12
    %v520 = vld [vmem:[%s519] sm:$0x1]
    %s521 = scalar_lea.vmem %s0, 75
    %v522 = vld [vmem:[%s521] sm:$0x2]
    %vm523 = vcmask 1041409
    %v524 = vsel %vm523, %v522, %v520
    %525 = vrot.lane.b32.xlu0 %v524, 24
    %v526 = vpop.permute.xlu0 %525
    %vm527 = vcmask 212160
    %528 = vst.msk [vmem:[#allocation0] sm:$0x3] %vm527, %v526
    %s529 = scalar_lea.vmem %s0, 11
    %v530 = vld [vmem:[%s529] sm:$0x1]
    %s531 = scalar_lea.vmem %s0, 74
    %v532 = vld [vmem:[%s531] sm:$0x2]
    %vm533 = vcmask 1041409
    %v534 = vsel %vm533, %v532, %v530
    %535 = vrot.lane.b32.xlu0 %v534, 22
    %v536 = vpop.permute.xlu0 %535
    %vm537 = vcmask 195760
    %538 = vst.msk [vmem:[#allocation0] sm:$0x3] %vm537, %v536
    %s539 = scalar_lea.vmem %s0, 10
    %v540 = vld [vmem:[%s539] sm:$0x1]
    %s541 = scalar_lea.vmem %s0, 73
    %v542 = vld [vmem:[%s541] sm:$0x2]
    %vm543 = vcmask 1041409
    %v544 = vsel %vm543, %v542, %v540
    %545 = vrot.lane.b32.xlu0 %v544, 20
    %v546 = vpop.permute.xlu0 %545
    %vm547 = vcmask 179360
    %548 = vst.msk [vmem:[#allocation0] sm:$0x3] %vm547, %v546
    %s549 = scalar_lea.vmem %s0, 9
    %v550 = vld [vmem:[%s549] sm:$0x1]
    %s551 = scalar_lea.vmem %s0, 72
    %v552 = vld [vmem:[%s551] sm:$0x2]
    %vm553 = vcmask 1041409
    %v554 = vsel %vm553, %v552, %v550
    %555 = vrot.lane.b32.xlu0 %v554, 18
    %v556 = vpop.permute.xlu0 %555
    %vm557 = vcmask 162960
    %558 = vst.msk [vmem:[#allocation0] sm:$0x3] %vm557, %v556
    %s559 = scalar_lea.vmem %s0, 8
    %v560 = vld [vmem:[%s559] sm:$0x1]
    %s561 = scalar_lea.vmem %s0, 71
    %v562 = vld [vmem:[%s561] sm:$0x2]
    %vm563 = vcmask 1041409
    %v564 = vsel %vm563, %v562, %v560
    %565 = vrot.lane.b32.xlu0 %v564, 16
    %v566 = vpop.permute.xlu0 %565
    %vm567 = vcmask 146560
    %568 = vst.msk [vmem:[#allocation0] sm:$0x3] %vm567, %v566
    %s569 = scalar_lea.vmem %s0, 7
    %v570 = vld [vmem:[%s569] sm:$0x1]
    %s571 = scalar_lea.vmem %s0, 70
    %v572 = vld [vmem:[%s571] sm:$0x2]
    %vm573 = vcmask 1041409
    %v574 = vsel %vm573, %v572, %v570
    %575 = vrot.lane.b32.xlu0 %v574, 14
    %v576 = vpop.permute.xlu0 %575
    %vm577 = vcmask 130160
    %578 = vst.msk [vmem:[#allocation0] sm:$0x3] %vm577, %v576
    %s579 = scalar_lea.vmem %s0, 6
    %v580 = vld [vmem:[%s579] sm:$0x1]
    %s581 = scalar_lea.vmem %s0, 69
    %v582 = vld [vmem:[%s581] sm:$0x2]
    %vm583 = vcmask 1041409
    %v584 = vsel %vm583, %v582, %v580
    %585 = vrot.lane.b32.xlu0 %v584, 12
    %v586 = vpop.permute.xlu0 %585
    %vm587 = vcmask 113760
    %588 = vst.msk [vmem:[#allocation0] sm:$0x3] %vm587, %v586
    %s589 = scalar_lea.vmem %s0, 5
    %v590 = vld [vmem:[%s589] sm:$0x1]
    %s591 = scalar_lea.vmem %s0, 68
    %v592 = vld [vmem:[%s591] sm:$0x2]
    %vm593 = vcmask 1041409
    %v594 = vsel %vm593, %v592, %v590
    %595 = vrot.lane.b32.xlu0 %v594, 10
    %v596 = vpop.permute.xlu0 %595
    %vm597 = vcmask 97360
    %598 = vst.msk [vmem:[#allocation0] sm:$0x3] %vm597, %v596
    %s599 = scalar_lea.vmem %s0, 4
    %v600 = vld [vmem:[%s599] sm:$0x1]
    %s601 = scalar_lea.vmem %s0, 67
    %v602 = vld [vmem:[%s601] sm:$0x2]
    %vm603 = vcmask 1041409
    %v604 = vsel %vm603, %v602, %v600
    %605 = vrot.lane.b32.xlu0 %v604, 8
    %v606 = vpop.permute.xlu0 %605
    %vm607 = vcmask 80960
    %608 = vst.msk [vmem:[#allocation0] sm:$0x3] %vm607, %v606
    %s609 = scalar_lea.vmem %s0, 3
    %v610 = vld [vmem:[%s609] sm:$0x1]
    %s611 = scalar_lea.vmem %s0, 66
    %v612 = vld [vmem:[%s611] sm:$0x2]
    %vm613 = vcmask 1041409
    %v614 = vsel %vm613, %v612, %v610
    %615 = vrot.lane.b32.xlu0 %v614, 6
    %v616 = vpop.permute.xlu0 %615
    %vm617 = vcmask 64560
    %618 = vst.msk [vmem:[#allocation0] sm:$0x3] %vm617, %v616
    %s619 = scalar_lea.vmem %s0, 2
    %v620 = vld [vmem:[%s619] sm:$0x1]
    %s621 = scalar_lea.vmem %s0, 65
    %v622 = vld [vmem:[%s621] sm:$0x2]
    %vm623 = vcmask 1041409
    %v624 = vsel %vm623, %v622, %v620
    %625 = vrot.lane.b32.xlu0 %v624, 4
    %v626 = vpop.permute.xlu0 %625
    %vm627 = vcmask 48160
    %628 = vst.msk [vmem:[#allocation0] sm:$0x3] %vm627, %v626
    %s629 = scalar_lea.vmem %s0, 1
    %v630 = vld [vmem:[%s629] sm:$0x1]
    %s631 = scalar_lea.vmem %s0, 64
    %v632 = vld [vmem:[%s631] sm:$0x2]
    %vm633 = vcmask 1041409
    %v634 = vsel %vm633, %v632, %v630
    %635 = vrot.lane.b32.xlu0 %v634, 2
    %v636 = vpop.permute.xlu0 %635
    %vm637 = vcmask 31760
    %638 = vst.msk [vmem:[#allocation0] sm:$0x3] %vm637, %v636
    %s640 = sshll.u32 1, 2
    %s641 = ssub.s32 %s640, 1
    %v643 = vld [vmem:[#allocation0] sm:%s641]
    %s644 = sshll.u32 1, 2
    %s645 = ssub.s32 %s644, 1
    %646 = vst [vmem:[%s1] sm:%s645] %v643

// kernel: _device_forward.1
$region0: #{_device_forward.1}
  #allocation0 [shape = 'u32[]', space=smem, size = 0x4, offset = 0x4, fixed_abs, tag = 'smem constant byte address 0x4 - core index']
  #allocation1 [shape = 'u32[144,128]{1,0:T(1,128)}', space=vmem, size = 0x12000, scoped, tag = 'internal scratch']
  %s0 = inlined_call_operand.vmem [shape: f32[24,128], index: 0, kind: input, shape index: {}]
  %s1 = inlined_call_operand.vmem [shape: f32[19,128], index: 1, kind: input, shape index: {}]
  %s2 = inlined_call_operand.vmem [shape: f32[8,34], index: 2, kind: input, shape index: {}]
  %s3 = inlined_call_operand.vmem [shape: bf16[32,16], index: 3, kind: input, shape index: {}]
  %s4 = inlined_call_operand.hbm [shape: f32[1,128], index: 4, kind: output, shape index: {}]
  %s5 = sld [smem:[#allocation0]]
  $region26: #{_device_forward.1} parent=0
    _
  %s7 = ssub.s32 1, %s5
  %s8 = scalar_select 0, %s7, %s5
  $region1: #{_device_forward.1} parent=0
    #allocation2 [shape = 'u8[512]{0}', space=vmem, size = 0x400, scoped, tag = 'output window, operand 0, single buffered']
    #allocation3 [shape = 's32[1]{0}', space=sflag, size = 0x4, scoped, tag = 'scoped memory for _device_forward.1']
    %9 = vsyncpa [#allocation3], 0
    // Predicated region
    $region2: #{_device_forward.1} parent=1 // pred_check
      _
    $region3: #{_device_forward.1} parent=1 // pred_check_branch
      %11 = sbr.rel (0) target = $region5
    $region4: #{_device_forward.1} parent=1 // pred_region
      _
    $region5: #{_device_forward.1} parent=1 // pred_fallthru
      _
    // Predicated region
    $region6: #{_device_forward.1} parent=1 // pred_check
      _
    $region7: #{_device_forward.1} parent=1 // pred_check_branch
      %13 = sbr.rel (0) target = $region9
    $region8: #{_device_forward.1} parent=1 // pred_region
      _
    $region9: #{_device_forward.1} parent=1 // pred_fallthru
      _
    // Predicated region
    $region10: #{_device_forward.1} parent=1 // pred_check
      _
    $region11: #{_device_forward.1} parent=1 // pred_check_branch
      %15 = sbr.rel (0) target = $region13
    $region12: #{_device_forward.1} parent=1 // pred_region
      _
    $region13: #{_device_forward.1} parent=1 // pred_fallthru
      _
    // Predicated region
    $region14: #{_device_forward.1} parent=1 // pred_check
      _
    $region15: #{_device_forward.1} parent=1 // pred_check_branch
      %17 = sbr.rel (0) target = $region17
    $region16: #{_device_forward.1} parent=1 // pred_region
      _
    $region17: #{_device_forward.1} parent=1 // pred_fallthru
      _
    %v19 = vld [vmem:[%s0] sm:$0xff]
    %v20 = vld [vmem:[%s0 + $0x8] sm:$0xff]
    %v21 = vld [vmem:[%s0 + $0x10] sm:$0xff]
    %v22 = vmax.f32 %v19, 0.0
    %v23 = vmul.f32 %v19, %v20
    %v24 = vsub.f32 %v22, %v23
    %v25 = vand.u32 2147483647, %v19
    %v26 = vsub.f32 0.0, %v25
    %v27 = vmul.f32 %v26, 1.442695
    %v28 = vpow.pop %v27
    %v29 = vadd.f32 %v28, 1.0
    %v30 = vlog2.pop %v29
    %v31 = vmul.f32 %v30, 0.6931472
    %v32 = vadd.f32 %v24, %v31
    %v33 = vmul.f32 %v32, %v21
    %34 = vadd.xlane.f32.xlu0 %v33
    %v35 = vpop.xlane.xlu0 %34
    %v36 = vrot.slane %v35, 4
    %v37 = vadd.f32 %v35, %v36
    %v38 = vrot.slane %v37, 2
    %v39 = vadd.f32 %v37, %v38
    %v40 = vrot.slane %v39, 1
    %v41 = vadd.f32 %v39, %v40
    %s42 = vtos %v41
    %v43 = vstv %s42
    %v44 = vld [vmem:[%s1] sm:$0xff]
    %v45 = vld [vmem:[%s1 + $0x8] sm:$0xff]
    %v46 = vld [vmem:[%s1 + $0x10] sm:$0x7]
    %v47 = vmul.f32 %v44, 0.5
    %v49 = vrot.slane %v47, 2
    %v51 = vsub.f32 %v44, %v49
    %v52 = vadd.f32 %v44, %v49
    %v53 = vmul.f32 %v45, 0.5
    %v55 = vrot.slane %v53, 2
    %v57 = vsub.f32 %v45, %v55
    %v58 = vadd.f32 %v45, %v55
    %v60 = vrot.slane %v58, 1
    %v62 = vmin.f32 %v52, %v60
    %v64 = vrot.slane %v57, 1
    %v66 = vmax.f32 %v51, %v64
    %v67 = vsub.f32 %v62, %v66
    %v68 = vmax.f32 %v67, 0.0
    %v70 = vrot.slane %v68, 1
    %v72 = vmul.f32 %v68, %v70
    %v74 = vrot.slane %v44, 1
    %v76 = vmul.f32 %v44, %v74
    %v78 = vrot.slane %v45, 1
    %v80 = vmul.f32 %v45, %v78
    %v82 = vrot.slane %v80, 1
    %v84 = vadd.f32 %v76, %v82
    %v86 = vrot.slane %v72, 6
    %v88 = vsub.f32 %v84, %v86
    %v89 = vmax.f32 %v88, 1e-07
    %v91 = vrot.slane %v89, 2
    %v93 = vrcp.pop %v91
    %v94 = vmul.f32 %v72, %v93
    %v95 = vsub.f32 %v44, %v78
    %v96 = vmul.f32 %v95, %v95
    %v98 = vrot.slane %v96, 1
    %v100 = vadd.f32 %v96, %v98
    %v101 = vmax.f32 %v52, %v60
    %v102 = vmin.f32 %v51, %v64
    %v103 = vsub.f32 %v101, %v102
    %v104 = vmul.f32 %v103, %v103
    %v106 = vrot.slane %v104, 1
    %v108 = vadd.f32 %v104, %v106
    %v109 = vrot.slane %v45, 6
    %v111 = vsub.f32 %v45, %v109
    %v112 = vmul.f32 %v111, %v111
    %v113 = vmul.f32 %v112, 0.40528473
    %v114 = vsub.f32 1.0, %v94
    %v115 = vadd.f32 %v114, %v113
    %v116 = vmax.f32 %v115, 1e-07
    %v117 = vrcp.pop %v116
    %v118 = vmul.f32 %v113, %v117
    %v119 = vmax.f32 %v108, 1e-07
    %v120 = vrcp.pop %v119
    %v121 = vmul.f32 %v100, %v120
    %v122 = vsub.f32 %v94, %v121
    %v123 = vmul.f32 %v118, %v113
    %v124 = vsub.f32 %v122, %v123
    %v125 = vmul.f32 %v45, 0.015625
    %v127 = vrot.slane %v125, 1
    %v129 = vmul.f32 %v125, %v127
    %v130 = vsub.f32 2.0, %v129
    %v131 = vsub.f32 1.0, %v124
    %v133 = vrot.slane %v130, 3
    %v135 = vmul.f32 %v131, %v133
    %v136 = vrot.slane %v45, 5
    %v138 = vmul.f32 %v135, %v136
    %vm139 = vcmask 1040384
    %v140 = vsel %vm139, %v138, 0.0
    %141 = vadd.xlane.f32.xlu0 %v140
    %v142 = vpop.xlane.xlu0 %141
    %v143 = vrot.slane %v142, 4
    %v144 = vadd.f32 %v142, %v143
    %v145 = vrot.slane %v144, 2
    %v146 = vadd.f32 %v144, %v145
    %v147 = vrot.slane %v146, 1
    %v148 = vadd.f32 %v146, %v147
    %s149 = vtos %v148
    %v150 = vstv %s149
    %vm151 = vcmask 1047556
    %v152 = vsel %vm151, %v44, -inf
    %v153 = vrot.slane %v152, 4
    %v154 = vmax.f32 %v152, %v153
    %v155 = vrot.slane %v154, 2
    %v156 = vmax.f32 %v154, %v155
    %v157 = vrot.slane %v156, 1
    %v158 = vmax.f32 %v156, %v157
    %v159 = vsub.f32 %v44, %v158
    %v160 = vmul.f32 %v159, 1.442695
    %v161 = vpow.pop %v160
    %v163 = vrot.slane %v161, 4
    %vm165 = vcmask 1043456
    %v166 = vsel %vm165, %v163, 0.0
    %v167 = vrot.slane %v166, 4
    %v168 = vadd.f32 %v166, %v167
    %v169 = vrot.slane %v168, 2
    %v170 = vadd.f32 %v168, %v169
    %v171 = vrot.slane %v170, 1
    %v172 = vadd.f32 %v170, %v171
    %v173 = vlog2.pop %v172
    %v174 = vmul.f32 %v173, 0.6931472
    %v175 = vadd.f32 %v174, %v158
    %v176 = vsub.f32 %v44, %v175
    %v178 = vrot.slane %v176, 5
    %v180 = vmul.f32 %v45, %v178
    %v181 = vmul.f32 %v46, %v178
    %v184 = vrot.slane %v180, 7
    %v185 = vrot.slane %v181, 7
    %v186 = vsel %vm139, %v184, %v185
    %v188 = vsel %vm165, %v186, 0.0
    %v189 = vrot.slane %v188, 4
    %v190 = vadd.f32 %v188, %v189
    %v191 = vrot.slane %v190, 2
    %v192 = vadd.f32 %v190, %v191
    %v193 = vrot.slane %v192, 1
    %v194 = vadd.f32 %v192, %v193
    %v195 = vsub.f32 0.0, %v194
    %v196 = vmul.f32 %v195, %v45
    %v198 = vrot.slane %v196, 5
    %v200 = vsel %vm139, %v198, 0.0
    %201 = vadd.xlane.f32.xlu0 %v200
    %v202 = vpop.xlane.xlu0 %201
    %v203 = vrot.slane %v202, 4
    %v204 = vadd.f32 %v202, %v203
    %v205 = vrot.slane %v204, 2
    %v206 = vadd.f32 %v204, %v205
    %v207 = vrot.slane %v206, 1
    %v208 = vadd.f32 %v206, %v207
    %s209 = vtos %v208
    %v210 = vstv %s209
    %v211 = vld [vmem:[%s2] sm:$0xff]
    %v212 = vcvt.f32.s32.to.zero.pseudo %v211
    %v213 = vmul.f32 %v211, %v211
    %vm214 = vcmask 261120
    %v215 = vsel %vm214, %v213, 0.0
    %216 = vadd.xlane.f32.xlu0 %v215
    %v217 = vpop.xlane.xlu0 %216
    %v218 = vmax.f32 %v217, 1e-24
    %v219 = vrsqrt.pop %v218
    %v220 = vmul.f32 %v211, %v219
    %v221 = vpack.c.bf16 %v220, %v220
    %v222 = vld [vmem:[%s3] sm:$0xf]
    %v223 = vld [vmem:[%s3 + $0x4] sm:$0xf]
    %v224 = vld [vmem:[%s3 + $0x8] sm:$0xf]
    %v225 = vld [vmem:[%s3 + $0xc] sm:$0xf]
    %v230 = vunpack.c.l.b16 %v222
    %v231 = vunpack.c.l.b16 %v223
    %v232 = vunpack.c.l.b16 %v224
    %v233 = vunpack.c.l.b16 %v225
    %v234 = vpack.c.b16 %v231, %v230
    %v235 = vpack.c.b16 %v233, %v232
    %v239 = vsel %vm214, %v221, 0
    %241 = vmatprep.subr.bf16.mxu0 0
    %242 = vmatpush1.bf16.msra.mxu0 0
    %243 = vmatprep.subr.bf16.mxu0 0
    %244 = vmatpush1.bf16.msra.mxu0 0
    %245 = vmatprep.subr.bf16.mxu0 0
    %246 = vmatpush1.bf16.msra.mxu0 0
    %247 = vmatprep.subr.bf16.mxu0 0
    %248 = vmatpush1.bf16.msra.mxu0 0
    %249 = vmatprep.subr.bf16.mxu0 0
    %250 = vmatpush1.bf16.msra.mxu0 0
    %251 = vmatprep.subr.bf16.mxu0 0
    %252 = vmatpush1.bf16.msra.mxu0 0
    %253 = vmatprep.subr.bf16.mxu0 0
    %254 = vmatpush1.bf16.msra.mxu0 %v235
    %255 = vmatprep.subr.bf16.mxu0 0
    %256 = vmatpush1.bf16.msra.mxu0 %v234
    %257 = vmatprep.subr.bf16.mxu0 0
    %258 = vmatpush2.bf16.msra.mxu0 0
    %259 = vmatprep.subr.bf16.mxu0 0
    %260 = vmatpush2.bf16.msra.mxu0 0
    %261 = vmatprep.subr.bf16.mxu0 0
    %262 = vmatpush2.bf16.msra.mxu0 0
    %263 = vmatprep.subr.bf16.mxu0 0
    %264 = vmatpush2.bf16.msra.mxu0 0
    %265 = vmatprep.subr.bf16.mxu0 0
    %266 = vmatpush2.bf16.msra.mxu0 0
    %267 = vmatprep.subr.bf16.mxu0 0
    %268 = vmatpush2.bf16.msra.mxu0 0
    %269 = vmatprep.subr.bf16.mxu0 0
    %270 = vmatpush2.bf16.msra.mxu0 0
    %271 = vmatprep.subr.bf16.mxu0 0
    %272 = vmatpush2.bf16.msra.mxu0 0
    %273 = vmatprep.mubr.bf16.mxu0 0
    %274 = vmatmul.mubr.bf16.gmra.mxu0 %v239
    %v275 = vpop.f32.mrf.mxu0
    %v276 = vadd.f32 0.0, %v275
    %v277 = vpop.f32.mrf.mxu0
    %v278 = vpop.f32.mrf.mxu0
    %v279 = vpop.f32.mrf.mxu0
    %280 = vdwg.mxu0
    %vm281 = vcmask 130048
    %v282 = vsel %vm281, %v276, -inf
    %283 = vmax.xlane.f32.xlu0 %v282
    %v284 = vpop.xlane.xlu0 %283
    %v285 = vsub.f32 %v276, %v284
    %v286 = vmul.f32 %v285, 1.442695
    %v287 = vpow.pop %v286
    %v288 = vsel %vm281, %v287, 0.0
    %289 = vadd.xlane.f32.xlu0 %v288
    %v290 = vpop.xlane.xlu0 %289
    %v291 = vlog2.pop %v290
    %v292 = vmul.f32 %v291, 0.6931472
    %v293 = vadd.f32 %v292, %v284
    %v294 = vlaneseq
    %v295 = vand.u32 %v294, 127
    %296 = vset.pattern.permute.xlu0 32
    %297 = vperm.xlu0 %296, %v212
    %v298 = vpop.permute.xlu0 %297
    %vm299 = vcmp.eq.s32.totalorder %v295, %v298
    %v300 = vsel %vm299, %v276, 0.0
    %v301 = vsel %vm281, %v300, 0.0
    %302 = vadd.xlane.f32.xlu0 %v301
    %v303 = vpop.xlane.xlu0 %302
    %v304 = vsub.f32 %v293, %v303
    %306 = vrot.lane.b32.xlu0 %v211, 95
    %v307 = vpop.permute.xlu0 %306
    %vm309 = vcmask 7168
    %v310 = vsel %vm309, %v307, 0.0
    %311 = vadd.xlane.f32.xlu0 %v310
    %v312 = vpop.xlane.xlu0 %311
    %v313 = vrot.slane %v312, 4
    %v314 = vadd.f32 %v312, %v313
    %v315 = vrot.slane %v314, 2
    %v316 = vadd.f32 %v314, %v315
    %v317 = vrot.slane %v316, 1
    %v318 = vadd.f32 %v316, %v317
    %s319 = vtos %v318
    %v320 = vstv %s319
    %v321 = vmax.f32 %v320, 1.0
    %v322 = vmul.f32 %v304, %v211
    %324 = vrot.lane.b32.xlu0 %v322, 95
    %v325 = vpop.permute.xlu0 %324
    %v327 = vsel %vm309, %v325, 0.0
    %328 = vadd.xlane.f32.xlu0 %v327
    %v329 = vpop.xlane.xlu0 %328
    %v330 = vrot.slane %v329, 4
    %v331 = vadd.f32 %v329, %v330
    %v332 = vrot.slane %v331, 2
    %v333 = vadd.f32 %v331, %v332
    %v334 = vrot.slane %v333, 1
    %v335 = vadd.f32 %v333, %v334
    %s336 = vtos %v335
    %v337 = vstv %s336
    %v338 = vrcp.pop %v321
    %v339 = vmul.f32 %v337, %v338
    %v340 = vadd.f32 %v43, %v210
    %v341 = vadd.f32 %v340, %v150
    %v342 = vadd.f32 %v341, %v339
    %v343 = vmul.f32 %v342, 0.5
    %vm344 = vcmp.eq.s32.totalorder %v295, 0
    %v345 = vsel %vm344, %v343, 0.0
    %vm346 = vcmp.eq.s32.totalorder %v295, 1
    %v347 = vsel %vm346, %v43, 0.0
    %v348 = vadd.f32 %v345, %v347
    %vm349 = vcmp.eq.s32.totalorder %v295, 2
    %v350 = vsel %vm349, %v150, 0.0
    %v351 = vadd.f32 %v348, %v350
    %vm352 = vcmp.eq.s32.totalorder %v295, 3
    %v353 = vsel %vm352, %v210, 0.0
    %v354 = vadd.f32 %v351, %v353
    %vm355 = vcmp.eq.s32.totalorder %v295, 4
    %v356 = vsel %vm355, %v339, 0.0
    %v357 = vadd.f32 %v354, %v356
    %358 = vst [vmem:[#allocation2] sm:$0x1] %v357
    // Predicated region
    $region18: #{_device_forward.1} parent=1 // pred_check
      _
    $region19: #{_device_forward.1} parent=1 // pred_check_branch
      %360 = sbr.rel (0) target = $region21
    $region20: #{_device_forward.1} parent=1 // pred_region
      %s362 = ssub.s32 16, 16
      %363 = vsyncadd [#allocation3], %s362
      %s365 = sshll.u32 [#allocation2], 4
      %s366 = int_to_ptr.vmem [resolvable:$true] %s365
      %368 = dma.vmem_to_hbm [thread:$0]  %s366, 16, %s4, [#allocation3]
    $region21: #{_device_forward.1} parent=1 // pred_fallthru
      _
    // Predicated region
    $region22: #{_device_forward.1} parent=1 // pred_check
      _
    $region23: #{_device_forward.1} parent=1 // pred_check_branch
      %370 = sbr.rel (0) target = $region25
    $region24: #{_device_forward.1} parent=1 // pred_region
      %371 = dma.done [#allocation3], 16
    $region25: #{_device_forward.1} parent=1 // pred_fallthru
      _
    %372 = vsyncpa [#allocation3], 1

</llo_original>
